<compile_context>
chip_gen: v5e
topology: v5e:2x2
jax: 0.10.0
libtpu: 0.0.40
codegen_flags: <defaults>
</compile_context>

<pallas_src>
import math
import jax
import jax.numpy as jnp
from jax.experimental import pallas as pl
from jax.experimental.pallas import tpu as pltpu

# ---- small synthetic BERT config -------------------------------------------------
B = 2            # batch
S = 8            # sequence length
H = 32           # hidden size (bert_output_dim)
NUM_HEADS = 2
HEAD_DIM = H // NUM_HEADS
INTER = 64       # FFN intermediate size
VOCAB = 50
TYPE_VOCAB = 2
MAX_POS = 16
NUM_LAYERS = 2
OUTPUT_DIM = 16  # output_dim of the wrapper's additional_linear_layer
LN_EPS = 1e-12


# ---- helpers used inside the kernel ----------------------------------------------
def _layer_norm(x, gamma, beta):
    mean = jnp.mean(x, axis=-1, keepdims=True)
    var = jnp.mean(jnp.square(x - mean), axis=-1, keepdims=True)
    return (x - mean) * jax.lax.rsqrt(var + LN_EPS) * gamma + beta


def _gelu(x):
    # TODO(synk): tanh-approx GELU ("gelu_new"); exact erf variant differs slightly.
    c = math.sqrt(2.0 / math.pi)
    return 0.5 * x * (1.0 + jnp.tanh(c * (x + 0.044715 * x * x * x)))


def _bf16(x):
    return x.astype(jnp.bfloat16)


# ---- fused forward kernel ----------------------------------------------------------
def fused_bert_kernel(emb_ref, mask_ref, eg_ref, eb_ref,
                      wq_ref, wk_ref, wv_ref, bq_ref, bk_ref, bv_ref,
                      wo_ref, bo_ref, ln1g_ref, ln1b_ref,
                      w1_ref, b1_ref, w2_ref, b2_ref, ln2g_ref, ln2b_ref,
                      ow_ref, ob_ref,
                      o_ref, x_sc):
    l = pl.program_id(1)

    # --- first layer step for this batch tile: embeddings-LayerNorm into VMEM scratch ---
    @pl.when(l == 0)
    def _init():
        x_sc[...] = _layer_norm(emb_ref[...], eg_ref[...], eb_ref[...])

    x = x_sc[...]                                   # (S, H) f32, VMEM-resident across layers
    mask = mask_ref[...]                            # (1, 1, S) additive bias

    # --- head-batched Q/K/V projections (bf16 operands, f32 accumulation) ---
    x_b = jnp.broadcast_to(_bf16(x), (NUM_HEADS, S, H))
    q = jnp.einsum('hsd,hdf->hsf', x_b, wq_ref[...],
                   preferred_element_type=jnp.float32) + bq_ref[...]
    k = jnp.einsum('hsd,hdf->hsf', x_b, wk_ref[...],
                   preferred_element_type=jnp.float32) + bk_ref[...]
    v = jnp.einsum('hsd,hdf->hsf', x_b, wv_ref[...],
                   preferred_element_type=jnp.float32) + bv_ref[...]

    # --- head-batched attention ---
    scale = 1.0 / math.sqrt(HEAD_DIM)
    s = jnp.einsum('hqd,hkd->hqk', _bf16(q), _bf16(k),
                   preferred_element_type=jnp.float32) * scale
    s = s + mask                                    # broadcast over heads / query rows
    s = s - jnp.max(s, axis=-1, keepdims=True)
    p = jnp.exp(s)
    p = p * pl.reciprocal(jnp.sum(p, axis=-1, keepdims=True), approx=True)
    ctx = jnp.einsum('hqk,hkd->hqd', _bf16(p), _bf16(v),
                     preferred_element_type=jnp.float32)

    # output projection as head-batched matmul + sum over heads (== fused (H,H) proj)
    attn = jnp.sum(jnp.einsum('hqd,hdf->hqf', _bf16(ctx), wo_ref[...],
                              preferred_element_type=jnp.float32),
                   axis=0) + bo_ref[...]

    h1 = _layer_norm(x + attn, ln1g_ref[...], ln1b_ref[...])

    # --- FFN ---
    ffn = _gelu(jnp.dot(_bf16(h1), w1_ref[...],
                        preferred_element_type=jnp.float32) + b1_ref[...])
    ffn = jnp.dot(_bf16(ffn), w2_ref[...],
                  preferred_element_type=jnp.float32) + b2_ref[...]
    x_sc[...] = _layer_norm(h1 + ffn, ln2g_ref[...], ln2b_ref[...])

    # --- last layer step: mean over seq + additional_linear_layer ---
    @pl.when(l == NUM_LAYERS - 1)
    def _finalize():
        pooled = jnp.mean(x_sc[...], axis=0, keepdims=True)          # (1, H)
        o_ref[...] = (jnp.dot(_bf16(pooled), ow_ref[...],
                              preferred_element_type=jnp.float32) + ob_ref[...])


# ---- wrapper -----------------------------------------------------------------------
def bert_wrapper_forward(params, token_ids, segment_ids, attention_mask):
    # Embedding gathers stay in XLA (data-dependent gather); everything else is fused.
    pos_ids = jnp.arange(S, dtype=jnp.int32)
    emb = (jnp.take(params["word_emb"], token_ids, axis=0)
           + jnp.take(params["type_emb"], segment_ids, axis=0)
           + jnp.take(params["pos_emb"], pos_ids, axis=0)[None, :, :])
    emb = emb.reshape(B * S, H)                      # wrapper-side layout plumbing

    # extended attention mask bias, broadcast over heads/queries inside the kernel
    mask_bias = ((1.0 - attention_mask.astype(jnp.float32)) * -10000.0).reshape(B, 1, S)

    const = lambda shape: pl.BlockSpec(shape, lambda b, l: (0,) * len(shape))
    per_layer = lambda shape: pl.BlockSpec((None,) + shape,
                                           lambda b, l: (l,) + (0,) * len(shape))

    in_specs = [
        pl.BlockSpec((S, H), lambda b, l: (b, 0)),           # embeddings (per batch tile)
        pl.BlockSpec((1, 1, S), lambda b, l: (b, 0, 0)),     # additive mask bias
        const((1, H)),                                       # embeddings LN gamma
        const((1, H)),                                       # embeddings LN beta
        per_layer((NUM_HEADS, H, HEAD_DIM)),                 # Wq (head-major, bf16)
        per_layer((NUM_HEADS, H, HEAD_DIM)),                 # Wk
        per_layer((NUM_HEADS, H, HEAD_DIM)),                 # Wv
        per_layer((NUM_HEADS, 1, HEAD_DIM)),                 # bq
        per_layer((NUM_HEADS, 1, HEAD_DIM)),                 # bk
        per_layer((NUM_HEADS, 1, HEAD_DIM)),                 # bv
        per_layer((NUM_HEADS, HEAD_DIM, H)),                 # Wo (head-major, bf16)
        per_layer((1, H)),                                   # bo
        per_layer((1, H)),                                   # attn LN gamma
        per_layer((1, H)),                                   # attn LN beta
        per_layer((H, INTER)),                               # FFN W1 (bf16)
        per_layer((1, INTER)),                               # FFN b1
        per_layer((INTER, H)),                               # FFN W2 (bf16)
        per_layer((1, H)),                                   # FFN b2
        per_layer((1, H)),                                   # output LN gamma
        per_layer((1, H)),                                   # output LN beta
        const((H, OUTPUT_DIM)),                              # additional_linear_layer W (bf16)
        const((1, OUTPUT_DIM)),                              # additional_linear_layer b
    ]

    out = pl.pallas_call(
        fused_bert_kernel,
        out_shape=jax.ShapeDtypeStruct((B, 1, OUTPUT_DIM), jnp.float32),
        grid=(B, NUM_LAYERS),
        in_specs=in_specs,
        out_specs=pl.BlockSpec((None, 1, OUTPUT_DIM), lambda b, l: (b, 0, 0)),
        scratch_shapes=[pltpu.VMEM((S, H), jnp.float32)],
        compiler_params=pltpu.CompilerParams(
            dimension_semantics=("parallel", "arbitrary"),
            vmem_limit_bytes=32 * 1024 * 1024),
    )(emb, mask_bias, params["emb_ln_g"], params["emb_ln_b"],
      params["wq"], params["wk"], params["wv"],
      params["bq"], params["bk"], params["bv"],
      params["wo"], params["bo"], params["ln1g"], params["ln1b"],
      params["w1"], params["b1"], params["w2"], params["b2"],
      params["ln2g"], params["ln2b"],
      params["out_w"], params["out_b"])
    return out.reshape(B, OUTPUT_DIM)


# ---- deterministic parameter init ---------------------------------------------------
def init_params(key):
    keys = jax.random.split(key, 16)
    it = iter(keys)

    def dense(shape, dtype=jnp.float32):
        return (0.02 * jax.random.normal(next(it), shape, jnp.float32)).astype(dtype)

    bf = jnp.bfloat16
    return {
        "word_emb": dense((VOCAB, H)),
        "pos_emb": dense((MAX_POS, H)),
        "type_emb": dense((TYPE_VOCAB, H)),
        "emb_ln_g": jnp.ones((1, H), jnp.float32),
        "emb_ln_b": jnp.zeros((1, H), jnp.float32),
        # per-layer encoder weights stacked along [NUM_LAYERS], head-major, bf16 matmul operands
        "wq": dense((NUM_LAYERS, NUM_HEADS, H, HEAD_DIM), bf),
        "wk": dense((NUM_LAYERS, NUM_HEADS, H, HEAD_DIM), bf),
        "wv": dense((NUM_LAYERS, NUM_HEADS, H, HEAD_DIM), bf),
        "bq": jnp.zeros((NUM_LAYERS, NUM_HEADS, 1, HEAD_DIM), jnp.float32),
        "bk": jnp.zeros((NUM_LAYERS, NUM_HEADS, 1, HEAD_DIM), jnp.float32),
        "bv": jnp.zeros((NUM_LAYERS, NUM_HEADS, 1, HEAD_DIM), jnp.float32),
        "wo": dense((NUM_LAYERS, NUM_HEADS, HEAD_DIM, H), bf),
        "bo": jnp.zeros((NUM_LAYERS, 1, H), jnp.float32),
        "ln1g": jnp.ones((NUM_LAYERS, 1, H), jnp.float32),
        "ln1b": jnp.zeros((NUM_LAYERS, 1, H), jnp.float32),
        "w1": dense((NUM_LAYERS, H, INTER), bf),
        "b1": jnp.zeros((NUM_LAYERS, 1, INTER), jnp.float32),
        "w2": dense((NUM_LAYERS, INTER, H), bf),
        "b2": jnp.zeros((NUM_LAYERS, 1, H), jnp.float32),
        "ln2g": jnp.ones((NUM_LAYERS, 1, H), jnp.float32),
        "ln2b": jnp.zeros((NUM_LAYERS, 1, H), jnp.float32),
        "out_w": dense((H, OUTPUT_DIM), bf),
        "out_b": jnp.zeros((1, OUTPUT_DIM), jnp.float32),
    }


# TODO(synk): add_transformer_layer is False in the reference __init__, so the
# extended-mask/extra-transformer branch is intentionally not implemented.

if __name__ == "__main__":
    key = jax.random.PRNGKey(0)
    pkey, tkey = jax.random.split(key)
    params = init_params(pkey)

    token_ids = jax.random.randint(tkey, (B, S), 0, VOCAB, dtype=jnp.int32)
    segment_ids = jnp.concatenate(
        [jnp.zeros((B, S // 2), jnp.int32), jnp.ones((B, S // 2), jnp.int32)], axis=1)
    # last two tokens of the second example are padding
    attention_mask = jnp.array(
        [[1] * S, [1] * (S - 2) + [0, 0]], dtype=jnp.float32)

    fwd = jax.jit(bert_wrapper_forward)
    out = fwd(params, token_ids, segment_ids, attention_mask)
    out = jax.block_until_ready(out)
    assert out.shape == (B, OUTPUT_DIM) and out.dtype == jnp.float32
    print("KERNEL_OK")
</pallas_src>

<mosaic_0001>
module attributes {stable_mosaic.version = 11 : i64} {
  func.func @fused_bert_kernel(%arg0: i32, %arg1: i32, %arg2: memref<8x32xf32, #tpu.memory_space<vmem>>, %arg3: memref<1x1x8xf32, #tpu.memory_space<vmem>>, %arg4: memref<1x32xf32, #tpu.memory_space<vmem>>, %arg5: memref<1x32xf32, #tpu.memory_space<vmem>>, %arg6: memref<1x2x32x16xbf16, #tpu.memory_space<vmem>>, %arg7: memref<1x2x32x16xbf16, #tpu.memory_space<vmem>>, %arg8: memref<1x2x32x16xbf16, #tpu.memory_space<vmem>>, %arg9: memref<1x2x1x16xf32, #tpu.memory_space<vmem>>, %arg10: memref<1x2x1x16xf32, #tpu.memory_space<vmem>>, %arg11: memref<1x2x1x16xf32, #tpu.memory_space<vmem>>, %arg12: memref<1x2x16x32xbf16, #tpu.memory_space<vmem>>, %arg13: memref<1x1x32xf32, #tpu.memory_space<vmem>>, %arg14: memref<1x1x32xf32, #tpu.memory_space<vmem>>, %arg15: memref<1x1x32xf32, #tpu.memory_space<vmem>>, %arg16: memref<1x32x64xbf16, #tpu.memory_space<vmem>>, %arg17: memref<1x1x64xf32, #tpu.memory_space<vmem>>, %arg18: memref<1x64x32xbf16, #tpu.memory_space<vmem>>, %arg19: memref<1x1x32xf32, #tpu.memory_space<vmem>>, %arg20: memref<1x1x32xf32, #tpu.memory_space<vmem>>, %arg21: memref<1x1x32xf32, #tpu.memory_space<vmem>>, %arg22: memref<32x16xbf16, #tpu.memory_space<vmem>>, %arg23: memref<1x16xf32, #tpu.memory_space<vmem>>, %arg24: memref<1x1x16xf32, #tpu.memory_space<vmem>>, %arg25: memref<8x32xf32, #tpu.memory_space<vmem>>) attributes {dimension_semantics = [#tpu.dimension_semantics<parallel>, #tpu.dimension_semantics<arbitrary>], iteration_bounds = array<i64: 2, 2>, scalar_prefetch = 0 : i64, scratch_operands = 1 : i64, tpu.core_type = #tpu.core_type<tc>, window_params = [{transform_indices = @transform_0, window_bounds = array<i64: 8, 32>}, {transform_indices = @transform_1, window_bounds = array<i64: 1, 1, 8>}, {pipeline_mode = #tpu.pipeline_mode<synchronous>, transform_indices = @transform_2, window_bounds = array<i64: 1, 32>}, {pipeline_mode = #tpu.pipeline_mode<synchronous>, transform_indices = @transform_3, window_bounds = array<i64: 1, 32>}, {transform_indices = @transform_4, window_bounds = array<i64: 1, 2, 32, 16>}, {transform_indices = @transform_5, window_bounds = array<i64: 1, 2, 32, 16>}, {transform_indices = @transform_6, window_bounds = array<i64: 1, 2, 32, 16>}, {transform_indices = @transform_7, window_bounds = array<i64: 1, 2, 1, 16>}, {transform_indices = @transform_8, window_bounds = array<i64: 1, 2, 1, 16>}, {transform_indices = @transform_9, window_bounds = array<i64: 1, 2, 1, 16>}, {transform_indices = @transform_10, window_bounds = array<i64: 1, 2, 16, 32>}, {transform_indices = @transform_11, window_bounds = array<i64: 1, 1, 32>}, {transform_indices = @transform_12, window_bounds = array<i64: 1, 1, 32>}, {transform_indices = @transform_13, window_bounds = array<i64: 1, 1, 32>}, {transform_indices = @transform_14, window_bounds = array<i64: 1, 32, 64>}, {transform_indices = @transform_15, window_bounds = array<i64: 1, 1, 64>}, {transform_indices = @transform_16, window_bounds = array<i64: 1, 64, 32>}, {transform_indices = @transform_17, window_bounds = array<i64: 1, 1, 32>}, {transform_indices = @transform_18, window_bounds = array<i64: 1, 1, 32>}, {transform_indices = @transform_19, window_bounds = array<i64: 1, 1, 32>}, {pipeline_mode = #tpu.pipeline_mode<synchronous>, transform_indices = @transform_20, window_bounds = array<i64: 32, 16>}, {pipeline_mode = #tpu.pipeline_mode<synchronous>, transform_indices = @transform_21, window_bounds = array<i64: 1, 16>}, {transform_indices = @transform_22, window_bounds = array<i64: 1, 1, 16>}]} {
    %c0_i32 = arith.constant 0 : i32
    %0 = arith.cmpi eq, %arg1, %c0_i32 : i32
    %1 = arith.extui %0 : i1 to i32
    %c0_i32_0 = arith.constant 0 : i32
    %2 = arith.cmpi ne, %1, %c0_i32_0 : i32
    scf.if %2 {
      %c0_88 = arith.constant 0 : index
      %c0_89 = arith.constant 0 : index
      %145 = vector.load %arg2[%c0_88, %c0_89] : memref<8x32xf32, #tpu.memory_space<vmem>>, vector<8x32xf32>
      %c0_90 = arith.constant 0 : index
      %c0_91 = arith.constant 0 : index
      %146 = vector.load %arg4[%c0_90, %c0_91] : memref<1x32xf32, #tpu.memory_space<vmem>>, vector<1x32xf32>
      %c0_92 = arith.constant 0 : index
      %c0_93 = arith.constant 0 : index
      %147 = vector.load %arg5[%c0_92, %c0_93] : memref<1x32xf32, #tpu.memory_space<vmem>>, vector<1x32xf32>
      %cst_94 = arith.constant dense<0.000000e+00> : vector<8xf32>
      %148 = vector.multi_reduction <add>, %145, %cst_94 [1] : vector<8x32xf32> to vector<8xf32>
      %149 = vector.shape_cast %148 : vector<8xf32> to vector<8x1xf32>
      %cst_95 = arith.constant 3.200000e+01 : f32
      %150 = vector.broadcast %cst_95 : f32 to vector<8x1xf32>
      %151 = arith.divf %149, %150 : vector<8x1xf32>
      %152 = vector.broadcast %151 : vector<8x1xf32> to vector<8x32xf32>
      %153 = arith.subf %145, %152 : vector<8x32xf32>
      %154 = arith.mulf %153, %153 : vector<8x32xf32>
      %cst_96 = arith.constant dense<0.000000e+00> : vector<8xf32>
      %155 = vector.multi_reduction <add>, %154, %cst_96 [1] : vector<8x32xf32> to vector<8xf32>
      %156 = vector.shape_cast %155 : vector<8xf32> to vector<8x1xf32>
      %cst_97 = arith.constant 3.200000e+01 : f32
      %157 = vector.broadcast %cst_97 : f32 to vector<8x1xf32>
      %158 = arith.divf %156, %157 : vector<8x1xf32>
      %159 = vector.broadcast %151 : vector<8x1xf32> to vector<8x32xf32>
      %160 = arith.subf %145, %159 : vector<8x32xf32>
      %cst_98 = arith.constant 9.99999996E-13 : f32
      %161 = vector.broadcast %cst_98 : f32 to vector<8x1xf32>
      %162 = arith.addf %158, %161 : vector<8x1xf32>
      %163 = math.rsqrt %162 : vector<8x1xf32>
      %164 = vector.broadcast %163 : vector<8x1xf32> to vector<8x32xf32>
      %165 = arith.mulf %160, %164 : vector<8x32xf32>
      %166 = vector.broadcast %146 : vector<1x32xf32> to vector<8x32xf32>
      %167 = arith.mulf %165, %166 : vector<8x32xf32>
      %168 = vector.broadcast %147 : vector<1x32xf32> to vector<8x32xf32>
      %169 = arith.addf %167, %168 : vector<8x32xf32>
      %c0_99 = arith.constant 0 : index
      %c0_100 = arith.constant 0 : index
      %170 = vector.load %arg25[%c0_99, %c0_100] : memref<8x32xf32, #tpu.memory_space<vmem>>, vector<8x32xf32>
      tpu.vector_store %arg25[%c0_99, %c0_100], %169 {strides = array<i32>} : memref<8x32xf32, #tpu.memory_space<vmem>>, vector<8x32xf32>,
    } else {
    }
    %c0 = arith.constant 0 : index
    %c0_1 = arith.constant 0 : index
    %3 = vector.load %arg25[%c0, %c0_1] : memref<8x32xf32, #tpu.memory_space<vmem>>, vector<8x32xf32>
    %c0_2 = arith.constant 0 : index
    %c0_3 = arith.constant 0 : index
    %c0_4 = arith.constant 0 : index
    %4 = vector.load %arg3[%c0_2, %c0_3, %c0_4] : memref<1x1x8xf32, #tpu.memory_space<vmem>>, vector<1x1x8xf32>
    %5 = arith.truncf %3 : vector<8x32xf32> to vector<8x32xbf16>
    %6 = vector.shape_cast %5 : vector<8x32xbf16> to vector<1x8x32xbf16>
    %7 = vector.broadcast %6 : vector<1x8x32xbf16> to vector<2x8x32xbf16>
    %c0_5 = arith.constant 0 : index
    %c0_6 = arith.constant 0 : index
    %c0_7 = arith.constant 0 : index
    %c0_8 = arith.constant 0 : index
    %8 = vector.load %arg6[%c0_5, %c0_6, %c0_7, %c0_8] : memref<1x2x32x16xbf16, #tpu.memory_space<vmem>>, vector<1x2x32x16xbf16>
    %9 = vector.shape_cast %8 : vector<1x2x32x16xbf16> to vector<2x32x16xbf16>
    "tpu.trace_start"() <{level = 10 : i32, message = "hsd,hdf->hsf"}> : () -> ()
    %cst = arith.constant dense<0.000000e+00> : vector<2x8x16xf32>
    %10 = tpu.matmul %7, %9, %cst {dimension_numbers = #tpu.dot_dimension_numbers<[2], [1], [1], [2], [0, 0, 0, 1, 1, 2], [0], [0]>} : vector<2x8x32xbf16>, vector<2x32x16xbf16>, vector<2x8x16xf32> -> vector<2x8x16xf32>
    "tpu.trace_stop"() : () -> ()
    %c0_9 = arith.constant 0 : index
    %c0_10 = arith.constant 0 : index
    %c0_11 = arith.constant 0 : index
    %c0_12 = arith.constant 0 : index
    %11 = vector.load %arg9[%c0_9, %c0_10, %c0_11, %c0_12] : memref<1x2x1x16xf32, #tpu.memory_space<vmem>>, vector<1x2x1x16xf32>
    %12 = vector.shape_cast %11 : vector<1x2x1x16xf32> to vector<2x1x16xf32>
    %13 = vector.broadcast %12 : vector<2x1x16xf32> to vector<2x8x16xf32>
    %14 = arith.addf %10, %13 : vector<2x8x16xf32>
    %c0_13 = arith.constant 0 : index
    %c0_14 = arith.constant 0 : index
    %c0_15 = arith.constant 0 : index
    %c0_16 = arith.constant 0 : index
    %15 = vector.load %arg7[%c0_13, %c0_14, %c0_15, %c0_16] : memref<1x2x32x16xbf16, #tpu.memory_space<vmem>>, vector<1x2x32x16xbf16>
    %16 = vector.shape_cast %15 : vector<1x2x32x16xbf16> to vector<2x32x16xbf16>
    "tpu.trace_start"() <{level = 10 : i32, message = "hsd,hdf->hsf"}> : () -> ()
    %cst_17 = arith.constant dense<0.000000e+00> : vector<2x8x16xf32>
    %17 = tpu.matmul %7, %16, %cst_17 {dimension_numbers = #tpu.dot_dimension_numbers<[2], [1], [1], [2], [0, 0, 0, 1, 1, 2], [0], [0]>} : vector<2x8x32xbf16>, vector<2x32x16xbf16>, vector<2x8x16xf32> -> vector<2x8x16xf32>
    "tpu.trace_stop"() : () -> ()
    %c0_18 = arith.constant 0 : index
    %c0_19 = arith.constant 0 : index
    %c0_20 = arith.constant 0 : index
    %c0_21 = arith.constant 0 : index
    %18 = vector.load %arg10[%c0_18, %c0_19, %c0_20, %c0_21] : memref<1x2x1x16xf32, #tpu.memory_space<vmem>>, vector<1x2x1x16xf32>
    %19 = vector.shape_cast %18 : vector<1x2x1x16xf32> to vector<2x1x16xf32>
    %20 = vector.broadcast %19 : vector<2x1x16xf32> to vector<2x8x16xf32>
    %21 = arith.addf %17, %20 : vector<2x8x16xf32>
    %c0_22 = arith.constant 0 : index
    %c0_23 = arith.constant 0 : index
    %c0_24 = arith.constant 0 : index
    %c0_25 = arith.constant 0 : index
    %22 = vector.load %arg8[%c0_22, %c0_23, %c0_24, %c0_25] : memref<1x2x32x16xbf16, #tpu.memory_space<vmem>>, vector<1x2x32x16xbf16>
    %23 = vector.shape_cast %22 : vector<1x2x32x16xbf16> to vector<2x32x16xbf16>
    "tpu.trace_start"() <{level = 10 : i32, message = "hsd,hdf->hsf"}> : () -> ()
    %cst_26 = arith.constant dense<0.000000e+00> : vector<2x8x16xf32>
    %24 = tpu.matmul %7, %23, %cst_26 {dimension_numbers = #tpu.dot_dimension_numbers<[2], [1], [1], [2], [0, 0, 0, 1, 1, 2], [0], [0]>} : vector<2x8x32xbf16>, vector<2x32x16xbf16>, vector<2x8x16xf32> -> vector<2x8x16xf32>
    "tpu.trace_stop"() : () -> ()
    %c0_27 = arith.constant 0 : index
    %c0_28 = arith.constant 0 : index
    %c0_29 = arith.constant 0 : index
    %c0_30 = arith.constant 0 : index
    %25 = vector.load %arg11[%c0_27, %c0_28, %c0_29, %c0_30] : memref<1x2x1x16xf32, #tpu.memory_space<vmem>>, vector<1x2x1x16xf32>
    %26 = vector.shape_cast %25 : vector<1x2x1x16xf32> to vector<2x1x16xf32>
    %27 = vector.broadcast %26 : vector<2x1x16xf32> to vector<2x8x16xf32>
    %28 = arith.addf %24, %27 : vector<2x8x16xf32>
    %29 = arith.truncf %14 : vector<2x8x16xf32> to vector<2x8x16xbf16>
    %30 = arith.truncf %21 : vector<2x8x16xf32> to vector<2x8x16xbf16>
    "tpu.trace_start"() <{level = 10 : i32, message = "hqd,hkd->hqk"}> : () -> ()
    %cst_31 = arith.constant dense<0.000000e+00> : vector<2x8x8xf32>
    %31 = tpu.matmul %29, %30, %cst_31 {dimension_numbers = #tpu.dot_dimension_numbers<[2], [2], [1], [1], [0, 0, 0, 1, 1, 1], [0], [0]>} : vector<2x8x16xbf16>, vector<2x8x16xbf16>, vector<2x8x8xf32> -> vector<2x8x8xf32>
    "tpu.trace_stop"() : () -> ()
    %cst_32 = arith.constant 2.500000e-01 : f32
    %32 = vector.broadcast %cst_32 : f32 to vector<2x8x8xf32>
    %33 = arith.mulf %31, %32 : vector<2x8x8xf32>
    %34 = vector.broadcast %4 : vector<1x1x8xf32> to vector<2x8x8xf32>
    %35 = arith.addf %33, %34 : vector<2x8x8xf32>
    %cst_33 = arith.constant dense<0xFF800000> : vector<2x8xf32>
    %36 = vector.multi_reduction <maximumf>, %35, %cst_33 [2] : vector<2x8x8xf32> to vector<2x8xf32>
    %37 = vector.shape_cast %36 : vector<2x8xf32> to vector<2x8x1xf32>
    %38 = vector.broadcast %37 : vector<2x8x1xf32> to vector<2x8x8xf32>
    %39 = arith.subf %35, %38 : vector<2x8x8xf32>
    %40 = math.exp %39 : vector<2x8x8xf32>
    %cst_34 = arith.constant dense<0.000000e+00> : vector<2x8xf32>
    %41 = vector.multi_reduction <add>, %40, %cst_34 [2] : vector<2x8x8xf32> to vector<2x8xf32>
    %42 = vector.shape_cast %41 : vector<2x8xf32> to vector<2x8x1xf32>
    %43 = tpu.reciprocal %42 {approx = true} : vector<2x8x1xf32> -> vector<2x8x1xf32>
    %44 = vector.broadcast %43 : vector<2x8x1xf32> to vector<2x8x8xf32>
    %45 = arith.mulf %40, %44 : vector<2x8x8xf32>
    %46 = arith.truncf %45 : vector<2x8x8xf32> to vector<2x8x8xbf16>
    %47 = arith.truncf %28 : vector<2x8x16xf32> to vector<2x8x16xbf16>
    "tpu.trace_start"() <{level = 10 : i32, message = "hqk,hkd->hqd"}> : () -> ()
    %cst_35 = arith.constant dense<0.000000e+00> : vector<2x8x16xf32>
    %48 = tpu.matmul %46, %47, %cst_35 {dimension_numbers = #tpu.dot_dimension_numbers<[2], [1], [1], [2], [0, 0, 0, 1, 1, 2], [0], [0]>} : vector<2x8x8xbf16>, vector<2x8x16xbf16>, vector<2x8x16xf32> -> vector<2x8x16xf32>
    "tpu.trace_stop"() : () -> ()
    %49 = arith.truncf %48 : vector<2x8x16xf32> to vector<2x8x16xbf16>
    %c0_36 = arith.constant 0 : index
    %c0_37 = arith.constant 0 : index
    %c0_38 = arith.constant 0 : index
    %c0_39 = arith.constant 0 : index
    %50 = vector.load %arg12[%c0_36, %c0_37, %c0_38, %c0_39] : memref<1x2x16x32xbf16, #tpu.memory_space<vmem>>, vector<1x2x16x32xbf16>
    %51 = vector.shape_cast %50 : vector<1x2x16x32xbf16> to vector<2x16x32xbf16>
    "tpu.trace_start"() <{level = 10 : i32, message = "hqd,hdf->hqf"}> : () -> ()
    %cst_40 = arith.constant dense<0.000000e+00> : vector<2x8x32xf32>
    %52 = tpu.matmul %49, %51, %cst_40 {dimension_numbers = #tpu.dot_dimension_numbers<[2], [1], [1], [2], [0, 0, 0, 1, 1, 2], [0], [0]>} : vector<2x8x16xbf16>, vector<2x16x32xbf16>, vector<2x8x32xf32> -> vector<2x8x32xf32>
    "tpu.trace_stop"() : () -> ()
    %cst_41 = arith.constant dense<0.000000e+00> : vector<8x32xf32>
    %53 = vector.multi_reduction <add>, %52, %cst_41 [0] : vector<2x8x32xf32> to vector<8x32xf32>
    %c0_42 = arith.constant 0 : index
    %c0_43 = arith.constant 0 : index
    %c0_44 = arith.constant 0 : index
    %54 = vector.load %arg13[%c0_42, %c0_43, %c0_44] : memref<1x1x32xf32, #tpu.memory_space<vmem>>, vector<1x1x32xf32>
    %55 = vector.shape_cast %54 : vector<1x1x32xf32> to vector<1x32xf32>
    %56 = vector.broadcast %55 : vector<1x32xf32> to vector<8x32xf32>
    %57 = arith.addf %53, %56 : vector<8x32xf32>
    %58 = arith.addf %3, %57 : vector<8x32xf32>
    %c0_45 = arith.constant 0 : index
    %c0_46 = arith.constant 0 : index
    %c0_47 = arith.constant 0 : index
    %59 = vector.load %arg14[%c0_45, %c0_46, %c0_47] : memref<1x1x32xf32, #tpu.memory_space<vmem>>, vector<1x1x32xf32>
    %60 = vector.shape_cast %59 : vector<1x1x32xf32> to vector<1x32xf32>
    %c0_48 = arith.constant 0 : index
    %c0_49 = arith.constant 0 : index
    %c0_50 = arith.constant 0 : index
    %61 = vector.load %arg15[%c0_48, %c0_49, %c0_50] : memref<1x1x32xf32, #tpu.memory_space<vmem>>, vector<1x1x32xf32>
    %62 = vector.shape_cast %61 : vector<1x1x32xf32> to vector<1x32xf32>
    %cst_51 = arith.constant dense<0.000000e+00> : vector<8xf32>
    %63 = vector.multi_reduction <add>, %58, %cst_51 [1] : vector<8x32xf32> to vector<8xf32>
    %64 = vector.shape_cast %63 : vector<8xf32> to vector<8x1xf32>
    %cst_52 = arith.constant 3.200000e+01 : f32
    %65 = vector.broadcast %cst_52 : f32 to vector<8x1xf32>
    %66 = arith.divf %64, %65 : vector<8x1xf32>
    %67 = vector.broadcast %66 : vector<8x1xf32> to vector<8x32xf32>
    %68 = arith.subf %58, %67 : vector<8x32xf32>
    %69 = arith.mulf %68, %68 : vector<8x32xf32>
    %cst_53 = arith.constant dense<0.000000e+00> : vector<8xf32>
    %70 = vector.multi_reduction <add>, %69, %cst_53 [1] : vector<8x32xf32> to vector<8xf32>
    %71 = vector.shape_cast %70 : vector<8xf32> to vector<8x1xf32>
    %cst_54 = arith.constant 3.200000e+01 : f32
    %72 = vector.broadcast %cst_54 : f32 to vector<8x1xf32>
    %73 = arith.divf %71, %72 : vector<8x1xf32>
    %74 = vector.broadcast %66 : vector<8x1xf32> to vector<8x32xf32>
    %75 = arith.subf %58, %74 : vector<8x32xf32>
    %cst_55 = arith.constant 9.99999996E-13 : f32
    %76 = vector.broadcast %cst_55 : f32 to vector<8x1xf32>
    %77 = arith.addf %73, %76 : vector<8x1xf32>
    %78 = math.rsqrt %77 : vector<8x1xf32>
    %79 = vector.broadcast %78 : vector<8x1xf32> to vector<8x32xf32>
    %80 = arith.mulf %75, %79 : vector<8x32xf32>
    %81 = vector.broadcast %60 : vector<1x32xf32> to vector<8x32xf32>
    %82 = arith.mulf %80, %81 : vector<8x32xf32>
    %83 = vector.broadcast %62 : vector<1x32xf32> to vector<8x32xf32>
    %84 = arith.addf %82, %83 : vector<8x32xf32>
    %85 = arith.truncf %84 : vector<8x32xf32> to vector<8x32xbf16>
    %c0_56 = arith.constant 0 : index
    %c0_57 = arith.constant 0 : index
    %c0_58 = arith.constant 0 : index
    %86 = vector.load %arg16[%c0_56, %c0_57, %c0_58] : memref<1x32x64xbf16, #tpu.memory_space<vmem>>, vector<1x32x64xbf16>
    %87 = vector.shape_cast %86 : vector<1x32x64xbf16> to vector<32x64xbf16>
    %cst_59 = arith.constant dense<0.000000e+00> : vector<8x64xf32>
    %88 = tpu.matmul %85, %87, %cst_59 {dimension_numbers = #tpu.dot_dimension_numbers<[1], [0], [0], [1], [0, 0, 1, 1], [], []>} : vector<8x32xbf16>, vector<32x64xbf16>, vector<8x64xf32> -> vector<8x64xf32>
    %c0_60 = arith.constant 0 : index
    %c0_61 = arith.constant 0 : index
    %c0_62 = arith.constant 0 : index
    %89 = vector.load %arg17[%c0_60, %c0_61, %c0_62] : memref<1x1x64xf32, #tpu.memory_space<vmem>>, vector<1x1x64xf32>
    %90 = vector.shape_cast %89 : vector<1x1x64xf32> to vector<1x64xf32>
    %91 = vector.broadcast %90 : vector<1x64xf32> to vector<8x64xf32>
    %92 = arith.addf %88, %91 : vector<8x64xf32>
    %cst_63 = arith.constant 5.000000e-01 : f32
    %93 = vector.broadcast %cst_63 : f32 to vector<8x64xf32>
    %94 = arith.mulf %93, %92 : vector<8x64xf32>
    %cst_64 = arith.constant 4.471500e-02 : f32
    %95 = vector.broadcast %cst_64 : f32 to vector<8x64xf32>
    %96 = arith.mulf %95, %92 : vector<8x64xf32>
    %97 = arith.mulf %96, %92 : vector<8x64xf32>
    %98 = arith.mulf %97, %92 : vector<8x64xf32>
    %99 = arith.addf %92, %98 : vector<8x64xf32>
    %cst_65 = arith.constant 0.797884583 : f32
    %100 = vector.broadcast %cst_65 : f32 to vector<8x64xf32>
    %101 = arith.mulf %100, %99 : vector<8x64xf32>
    %102 = math.tanh %101 : vector<8x64xf32>
    %cst_66 = arith.constant 1.000000e+00 : f32
    %103 = vector.broadcast %cst_66 : f32 to vector<8x64xf32>
    %104 = arith.addf %103, %102 : vector<8x64xf32>
    %105 = arith.mulf %94, %104 : vector<8x64xf32>
    %106 = arith.truncf %105 : vector<8x64xf32> to vector<8x64xbf16>
    %c0_67 = arith.constant 0 : index
    %c0_68 = arith.constant 0 : index
    %c0_69 = arith.constant 0 : index
    %107 = vector.load %arg18[%c0_67, %c0_68, %c0_69] : memref<1x64x32xbf16, #tpu.memory_space<vmem>>, vector<1x64x32xbf16>
    %108 = vector.shape_cast %107 : vector<1x64x32xbf16> to vector<64x32xbf16>
    %cst_70 = arith.constant dense<0.000000e+00> : vector<8x32xf32>
    %109 = tpu.matmul %106, %108, %cst_70 {dimension_numbers = #tpu.dot_dimension_numbers<[1], [0], [0], [1], [0, 0, 1, 1], [], []>} : vector<8x64xbf16>, vector<64x32xbf16>, vector<8x32xf32> -> vector<8x32xf32>
    %c0_71 = arith.constant 0 : index
    %c0_72 = arith.constant 0 : index
    %c0_73 = arith.constant 0 : index
    %110 = vector.load %arg19[%c0_71, %c0_72, %c0_73] : memref<1x1x32xf32, #tpu.memory_space<vmem>>, vector<1x1x32xf32>
    %111 = vector.shape_cast %110 : vector<1x1x32xf32> to vector<1x32xf32>
    %112 = vector.broadcast %111 : vector<1x32xf32> to vector<8x32xf32>
    %113 = arith.addf %109, %112 : vector<8x32xf32>
    %114 = arith.addf %84, %113 : vector<8x32xf32>
    %c0_74 = arith.constant 0 : index
    %c0_75 = arith.constant 0 : index
    %c0_76 = arith.constant 0 : index
    %115 = vector.load %arg20[%c0_74, %c0_75, %c0_76] : memref<1x1x32xf32, #tpu.memory_space<vmem>>, vector<1x1x32xf32>
    %116 = vector.shape_cast %115 : vector<1x1x32xf32> to vector<1x32xf32>
    %c0_77 = arith.constant 0 : index
    %c0_78 = arith.constant 0 : index
    %c0_79 = arith.constant 0 : index
    %117 = vector.load %arg21[%c0_77, %c0_78, %c0_79] : memref<1x1x32xf32, #tpu.memory_space<vmem>>, vector<1x1x32xf32>
    %118 = vector.shape_cast %117 : vector<1x1x32xf32> to vector<1x32xf32>
    %cst_80 = arith.constant dense<0.000000e+00> : vector<8xf32>
    %119 = vector.multi_reduction <add>, %114, %cst_80 [1] : vector<8x32xf32> to vector<8xf32>
    %120 = vector.shape_cast %119 : vector<8xf32> to vector<8x1xf32>
    %cst_81 = arith.constant 3.200000e+01 : f32
    %121 = vector.broadcast %cst_81 : f32 to vector<8x1xf32>
    %122 = arith.divf %120, %121 : vector<8x1xf32>
    %123 = vector.broadcast %122 : vector<8x1xf32> to vector<8x32xf32>
    %124 = arith.subf %114, %123 : vector<8x32xf32>
    %125 = arith.mulf %124, %124 : vector<8x32xf32>
    %cst_82 = arith.constant dense<0.000000e+00> : vector<8xf32>
    %126 = vector.multi_reduction <add>, %125, %cst_82 [1] : vector<8x32xf32> to vector<8xf32>
    %127 = vector.shape_cast %126 : vector<8xf32> to vector<8x1xf32>
    %cst_83 = arith.constant 3.200000e+01 : f32
    %128 = vector.broadcast %cst_83 : f32 to vector<8x1xf32>
    %129 = arith.divf %127, %128 : vector<8x1xf32>
    %130 = vector.broadcast %122 : vector<8x1xf32> to vector<8x32xf32>
    %131 = arith.subf %114, %130 : vector<8x32xf32>
    %cst_84 = arith.constant 9.99999996E-13 : f32
    %132 = vector.broadcast %cst_84 : f32 to vector<8x1xf32>
    %133 = arith.addf %129, %132 : vector<8x1xf32>
    %134 = math.rsqrt %133 : vector<8x1xf32>
    %135 = vector.broadcast %134 : vector<8x1xf32> to vector<8x32xf32>
    %136 = arith.mulf %131, %135 : vector<8x32xf32>
    %137 = vector.broadcast %116 : vector<1x32xf32> to vector<8x32xf32>
    %138 = arith.mulf %136, %137 : vector<8x32xf32>
    %139 = vector.broadcast %118 : vector<1x32xf32> to vector<8x32xf32>
    %140 = arith.addf %138, %139 : vector<8x32xf32>
    %c0_85 = arith.constant 0 : index
    %c0_86 = arith.constant 0 : index
    %141 = vector.load %arg25[%c0_85, %c0_86] : memref<8x32xf32, #tpu.memory_space<vmem>>, vector<8x32xf32>
    tpu.vector_store %arg25[%c0_85, %c0_86], %140 {strides = array<i32>} : memref<8x32xf32, #tpu.memory_space<vmem>>, vector<8x32xf32>,
    %c1_i32 = arith.constant 1 : i32
    %142 = arith.cmpi eq, %arg1, %c1_i32 : i32
    %143 = arith.extui %142 : i1 to i32
    %c0_i32_87 = arith.constant 0 : i32
    %144 = arith.cmpi ne, %143, %c0_i32_87 : i32
    scf.if %144 {
      %c0_88 = arith.constant 0 : index
      %c0_89 = arith.constant 0 : index
      %145 = vector.load %arg25[%c0_88, %c0_89] : memref<8x32xf32, #tpu.memory_space<vmem>>, vector<8x32xf32>
      %cst_90 = arith.constant dense<0.000000e+00> : vector<32xf32>
      %146 = vector.multi_reduction <add>, %145, %cst_90 [0] : vector<8x32xf32> to vector<32xf32>
      %147 = vector.shape_cast %146 : vector<32xf32> to vector<1x32xf32>
      %cst_91 = arith.constant 8.000000e+00 : f32
      %148 = vector.broadcast %cst_91 : f32 to vector<1x32xf32>
      %149 = arith.divf %147, %148 : vector<1x32xf32>
      %150 = arith.truncf %149 : vector<1x32xf32> to vector<1x32xbf16>
      %c0_92 = arith.constant 0 : index
      %c0_93 = arith.constant 0 : index
      %151 = vector.load %arg22[%c0_92, %c0_93] : memref<32x16xbf16, #tpu.memory_space<vmem>>, vector<32x16xbf16>
      %cst_94 = arith.constant dense<0.000000e+00> : vector<1x16xf32>
      %152 = tpu.matmul %150, %151, %cst_94 {dimension_numbers = #tpu.dot_dimension_numbers<[1], [0], [0], [1], [0, 0, 1, 1], [], []>} : vector<1x32xbf16>, vector<32x16xbf16>, vector<1x16xf32> -> vector<1x16xf32>
      %c0_95 = arith.constant 0 : index
      %c0_96 = arith.constant 0 : index
      %153 = vector.load %arg23[%c0_95, %c0_96] : memref<1x16xf32, #tpu.memory_space<vmem>>, vector<1x16xf32>
      %154 = arith.addf %152, %153 : vector<1x16xf32>
      %c0_97 = arith.constant 0 : index
      %c0_98 = arith.constant 0 : index
      %c0_99 = arith.constant 0 : index
      %155 = vector.load %arg24[%c0_97, %c0_98, %c0_99] : memref<1x1x16xf32, #tpu.memory_space<vmem>>, vector<1x1x16xf32>
      %156 = vector.shape_cast %155 : vector<1x1x16xf32> to vector<1x16xf32>
      %157 = vector.shape_cast %154 : vector<1x16xf32> to vector<1x1x16xf32>
      tpu.vector_store %arg24[%c0_97, %c0_98, %c0_99], %157 {strides = array<i32>} : memref<1x1x16xf32, #tpu.memory_space<vmem>>, vector<1x1x16xf32>,
    } else {
    }
    return
  }
  func.func @transform_0(%arg0: i32, %arg1: i32) -> (i32, i32) {
    %c0_i32 = arith.constant 0 : i32
    %c0_i32_0 = arith.constant 0 : i32
    return %arg0, %c0_i32 : i32, i32
  }
  func.func @transform_1(%arg0: i32, %arg1: i32) -> (i32, i32, i32) {
    %c0_i32 = arith.constant 0 : i32
    %c0_i32_0 = arith.constant 0 : i32
    %c0_i32_1 = arith.constant 0 : i32
    return %arg0, %c0_i32, %c0_i32_0 : i32, i32, i32
  }
  func.func @transform_2(%arg0: i32, %arg1: i32) -> (i32, i32) {
    %c0_i32 = arith.constant 0 : i32
    %c0_i32_0 = arith.constant 0 : i32
    %c0_i32_1 = arith.constant 0 : i32
    return %c0_i32, %c0_i32_0 : i32, i32
  }
  func.func @transform_3(%arg0: i32, %arg1: i32) -> (i32, i32) {
    %c0_i32 = arith.constant 0 : i32
    %c0_i32_0 = arith.constant 0 : i32
    %c0_i32_1 = arith.constant 0 : i32
    return %c0_i32, %c0_i32_0 : i32, i32
  }
  func.func @transform_4(%arg0: i32, %arg1: i32) -> (i32, i32, i32, i32) {
    %c0_i32 = arith.constant 0 : i32
    %c0_i32_0 = arith.constant 0 : i32
    %c0_i32_1 = arith.constant 0 : i32
    %c0_i32_2 = arith.constant 0 : i32
    return %arg1, %c0_i32, %c0_i32_0, %c0_i32_1 : i32, i32, i32, i32
  }
  func.func @transform_5(%arg0: i32, %arg1: i32) -> (i32, i32, i32, i32) {
    %c0_i32 = arith.constant 0 : i32
    %c0_i32_0 = arith.constant 0 : i32
    %c0_i32_1 = arith.constant 0 : i32
    %c0_i32_2 = arith.constant 0 : i32
    return %arg1, %c0_i32, %c0_i32_0, %c0_i32_1 : i32, i32, i32, i32
  }
  func.func @transform_6(%arg0: i32, %arg1: i32) -> (i32, i32, i32, i32) {
    %c0_i32 = arith.constant 0 : i32
    %c0_i32_0 = arith.constant 0 : i32
    %c0_i32_1 = arith.constant 0 : i32
    %c0_i32_2 = arith.constant 0 : i32
    return %arg1, %c0_i32, %c0_i32_0, %c0_i32_1 : i32, i32, i32, i32
  }
  func.func @transform_7(%arg0: i32, %arg1: i32) -> (i32, i32, i32, i32) {
    %c0_i32 = arith.constant 0 : i32
    %c0_i32_0 = arith.constant 0 : i32
    %c0_i32_1 = arith.constant 0 : i32
    %c0_i32_2 = arith.constant 0 : i32
    return %arg1, %c0_i32, %c0_i32_0, %c0_i32_1 : i32, i32, i32, i32
  }
  func.func @transform_8(%arg0: i32, %arg1: i32) -> (i32, i32, i32, i32) {
    %c0_i32 = arith.constant 0 : i32
    %c0_i32_0 = arith.constant 0 : i32
    %c0_i32_1 = arith.constant 0 : i32
    %c0_i32_2 = arith.constant 0 : i32
    return %arg1, %c0_i32, %c0_i32_0, %c0_i32_1 : i32, i32, i32, i32
  }
  func.func @transform_9(%arg0: i32, %arg1: i32) -> (i32, i32, i32, i32) {
    %c0_i32 = arith.constant 0 : i32
    %c0_i32_0 = arith.constant 0 : i32
    %c0_i32_1 = arith.constant 0 : i32
    %c0_i32_2 = arith.constant 0 : i32
    return %arg1, %c0_i32, %c0_i32_0, %c0_i32_1 : i32, i32, i32, i32
  }
  func.func @transform_10(%arg0: i32, %arg1: i32) -> (i32, i32, i32, i32) {
    %c0_i32 = arith.constant 0 : i32
    %c0_i32_0 = arith.constant 0 : i32
    %c0_i32_1 = arith.constant 0 : i32
    %c0_i32_2 = arith.constant 0 : i32
    return %arg1, %c0_i32, %c0_i32_0, %c0_i32_1 : i32, i32, i32, i32
  }
  func.func @transform_11(%arg0: i32, %arg1: i32) -> (i32, i32, i32) {
    %c0_i32 = arith.constant 0 : i32
    %c0_i32_0 = arith.constant 0 : i32
    %c0_i32_1 = arith.constant 0 : i32
    return %arg1, %c0_i32, %c0_i32_0 : i32, i32, i32
  }
  func.func @transform_12(%arg0: i32, %arg1: i32) -> (i32, i32, i32) {
    %c0_i32 = arith.constant 0 : i32
    %c0_i32_0 = arith.constant 0 : i32
    %c0_i32_1 = arith.constant 0 : i32
    return %arg1, %c0_i32, %c0_i32_0 : i32, i32, i32
  }
  func.func @transform_13(%arg0: i32, %arg1: i32) -> (i32, i32, i32) {
    %c0_i32 = arith.constant 0 : i32
    %c0_i32_0 = arith.constant 0 : i32
    %c0_i32_1 = arith.constant 0 : i32
    return %arg1, %c0_i32, %c0_i32_0 : i32, i32, i32
  }
  func.func @transform_14(%arg0: i32, %arg1: i32) -> (i32, i32, i32) {
    %c0_i32 = arith.constant 0 : i32
    %c0_i32_0 = arith.constant 0 : i32
    %c0_i32_1 = arith.constant 0 : i32
    return %arg1, %c0_i32, %c0_i32_0 : i32, i32, i32
  }
  func.func @transform_15(%arg0: i32, %arg1: i32) -> (i32, i32, i32) {
    %c0_i32 = arith.constant 0 : i32
    %c0_i32_0 = arith.constant 0 : i32
    %c0_i32_1 = arith.constant 0 : i32
    return %arg1, %c0_i32, %c0_i32_0 : i32, i32, i32
  }
  func.func @transform_16(%arg0: i32, %arg1: i32) -> (i32, i32, i32) {
    %c0_i32 = arith.constant 0 : i32
    %c0_i32_0 = arith.constant 0 : i32
    %c0_i32_1 = arith.constant 0 : i32
    return %arg1, %c0_i32, %c0_i32_0 : i32, i32, i32
  }
  func.func @transform_17(%arg0: i32, %arg1: i32) -> (i32, i32, i32) {
    %c0_i32 = arith.constant 0 : i32
    %c0_i32_0 = arith.constant 0 : i32
    %c0_i32_1 = arith.constant 0 : i32
    return %arg1, %c0_i32, %c0_i32_0 : i32, i32, i32
  }
  func.func @transform_18(%arg0: i32, %arg1: i32) -> (i32, i32, i32) {
    %c0_i32 = arith.constant 0 : i32
    %c0_i32_0 = arith.constant 0 : i32
    %c0_i32_1 = arith.constant 0 : i32
    return %arg1, %c0_i32, %c0_i32_0 : i32, i32, i32
  }
  func.func @transform_19(%arg0: i32, %arg1: i32) -> (i32, i32, i32) {
    %c0_i32 = arith.constant 0 : i32
    %c0_i32_0 = arith.constant 0 : i32
    %c0_i32_1 = arith.constant 0 : i32
    return %arg1, %c0_i32, %c0_i32_0 : i32, i32, i32
  }
  func.func @transform_20(%arg0: i32, %arg1: i32) -> (i32, i32) {
    %c0_i32 = arith.constant 0 : i32
    %c0_i32_0 = arith.constant 0 : i32
    %c0_i32_1 = arith.constant 0 : i32
    return %c0_i32, %c0_i32_0 : i32, i32
  }
  func.func @transform_21(%arg0: i32, %arg1: i32) -> (i32, i32) {
    %c0_i32 = arith.constant 0 : i32
    %c0_i32_0 = arith.constant 0 : i32
    %c0_i32_1 = arith.constant 0 : i32
    return %c0_i32, %c0_i32_0 : i32, i32
  }
  func.func @transform_22(%arg0: i32, %arg1: i32) -> (i32, i32, i32) {
    %c0_i32 = arith.constant 0 : i32
    %c0_i32_0 = arith.constant 0 : i32
    %c0_i32_1 = arith.constant 0 : i32
    return %arg0, %c0_i32, %c0_i32_0 : i32, i32, i32
  }
}

</mosaic_0001>

<llo_original>
// kernel: bert_wrapper_forward.1
$region0: #{bert_wrapper_forward.1}
  #allocation0 [shape = 'u32[]', space=smem, size = 0x4, offset = 0x4, fixed_abs, tag = 'smem constant byte address 0x4 - core index']
  #allocation1 [shape = 'u32[72,128]{1,0:T(1,128)}', space=vmem, size = 0x9000, scoped, tag = 'internal scratch']
  #allocation2 [shape = 'f32[8,32]{1,0:T(8,128)}', space=vmem, size = 0x1000, scoped, tag = 'scratch operand']
  %s0 = inlined_call_operand.vmem [shape: f32[16,32], index: 0, kind: input, shape index: {}]
  %s1 = inlined_call_operand.vmem [shape: f32[2,1,8], index: 1, kind: input, shape index: {}]
  %s2 = inlined_call_operand.vmem [shape: f32[1,32], index: 2, kind: input, shape index: {}]
  %s3 = inlined_call_operand.vmem [shape: f32[1,32], index: 3, kind: input, shape index: {}]
  %s4 = inlined_call_operand.vmem [shape: bf16[2,2,32,16], index: 4, kind: input, shape index: {}]
  %s5 = inlined_call_operand.vmem [shape: bf16[2,2,32,16], index: 5, kind: input, shape index: {}]
  %s6 = inlined_call_operand.vmem [shape: bf16[2,2,32,16], index: 6, kind: input, shape index: {}]
  %s7 = inlined_call_operand.vmem [shape: f32[2,2,1,16], index: 7, kind: input, shape index: {}]
  %s8 = inlined_call_operand.vmem [shape: f32[2,2,1,16], index: 8, kind: input, shape index: {}]
  %s9 = inlined_call_operand.vmem [shape: f32[2,2,1,16], index: 9, kind: input, shape index: {}]
  %s10 = inlined_call_operand.vmem [shape: bf16[2,2,16,32], index: 10, kind: input, shape index: {}]
  %s11 = inlined_call_operand.vmem [shape: f32[2,1,32], index: 11, kind: input, shape index: {}]
  %s12 = inlined_call_operand.vmem [shape: f32[2,1,32], index: 12, kind: input, shape index: {}]
  %s13 = inlined_call_operand.vmem [shape: f32[2,1,32], index: 13, kind: input, shape index: {}]
  %s14 = inlined_call_operand.vmem [shape: bf16[2,32,64], index: 14, kind: input, shape index: {}]
  %s15 = inlined_call_operand.vmem [shape: f32[2,1,64], index: 15, kind: input, shape index: {}]
  %s16 = inlined_call_operand.vmem [shape: bf16[2,64,32], index: 16, kind: input, shape index: {}]
  %s17 = inlined_call_operand.vmem [shape: f32[2,1,32], index: 17, kind: input, shape index: {}]
  %s18 = inlined_call_operand.vmem [shape: f32[2,1,32], index: 18, kind: input, shape index: {}]
  %s19 = inlined_call_operand.vmem [shape: f32[2,1,32], index: 19, kind: input, shape index: {}]
  %s20 = inlined_call_operand.vmem [shape: bf16[32,16], index: 20, kind: input, shape index: {}]
  %s21 = inlined_call_operand.vmem [shape: f32[1,16], index: 21, kind: input, shape index: {}]
  %s22 = inlined_call_operand.hbm [shape: f32[2,1,16], index: 22, kind: output, shape index: {}]
  %s23 = sld [smem:[#allocation0]]
  $region129: #{bert_wrapper_forward.1} parent=0
    _
  %s25 = ssub.s32 1, %s23
  %s26 = scalar_select 0, %s25, %s23
  $region1: #{bert_wrapper_forward.1} parent=0
    #allocation3 [shape = 'u8[1024]{0}', space=vmem, size = 0x400, scoped, tag = 'output window, operand 0']
    #allocation4 [shape = 's32[2]{0}', space=sflag, size = 0x8, scoped, tag = 'scoped memory for bert_wrapper_forward.1']
    %27 = vsyncpa [#allocation4], 0
    %s28 = scalar_lea.sflag [#allocation4], 1
    %29 = vsyncpa %s28, 0
    loop: start=0, step=1, limit=6
    $region2: #{bert_wrapper_forward.1} parent=1 // loop_pre_header
      _
    $region3: #{bert_wrapper_forward.1} parent=1 // loop_header
      %s31 = sphi 0, %s35
      %p32 = scmp.ge.s32.totalorder %s31, 6
      %s38 = sphi 0, %s50
      %s39 = sphi 0, %s46
      %s40 = sphi 0, %s38
      %s41 = sphi 0, %s39
      %s42 = sphi 0, %s40
      %s43 = sphi 0, %s41
      %s53 = sphi 0, %s55
      %s56 = sphi 0, %s53
      %s57 = sphi 0, %s56
      %s73 = sphi 0, %s57
      %s79 = sphi 0, %s81
      %s82 = sphi 0, %s79
      %s83 = sphi 0, %s82
      %s99 = sphi 0, %s83
      %s103 = sphi 0, %s103
      %s105 = sphi 0, %s103
      %s106 = sphi 0, %s105
      %s120 = sphi 0, %s106
      %s124 = sphi 0, %s124
      %s126 = sphi 0, %s124
      %s127 = sphi 0, %s126
      %s141 = sphi 0, %s127
      %s147 = sphi 0, %s149
      %s150 = sphi 0, %s147
      %s151 = sphi 0, %s150
      %s167 = sphi 0, %s151
      %s173 = sphi 0, %s175
      %s176 = sphi 0, %s173
      %s177 = sphi 0, %s176
      %s193 = sphi 0, %s177
      %s199 = sphi 0, %s201
      %s202 = sphi 0, %s199
      %s203 = sphi 0, %s202
      %s219 = sphi 0, %s203
      %s225 = sphi 0, %s227
      %s228 = sphi 0, %s225
      %s229 = sphi 0, %s228
      %s245 = sphi 0, %s229
      %s251 = sphi 0, %s253
      %s254 = sphi 0, %s251
      %s255 = sphi 0, %s254
      %s271 = sphi 0, %s255
      %s277 = sphi 0, %s279
      %s280 = sphi 0, %s277
      %s281 = sphi 0, %s280
      %s297 = sphi 0, %s281
      %s303 = sphi 0, %s305
      %s306 = sphi 0, %s303
      %s307 = sphi 0, %s306
      %s323 = sphi 0, %s307
      %s329 = sphi 0, %s331
      %s332 = sphi 0, %s329
      %s333 = sphi 0, %s332
      %s349 = sphi 0, %s333
      %s355 = sphi 0, %s357
      %s358 = sphi 0, %s355
      %s359 = sphi 0, %s358
      %s375 = sphi 0, %s359
      %s381 = sphi 0, %s383
      %s384 = sphi 0, %s381
      %s385 = sphi 0, %s384
      %s401 = sphi 0, %s385
      %s407 = sphi 0, %s409
      %s410 = sphi 0, %s407
      %s411 = sphi 0, %s410
      %s427 = sphi 0, %s411
      %s433 = sphi 0, %s435
      %s436 = sphi 0, %s433
      %s437 = sphi 0, %s436
      %s453 = sphi 0, %s437
      %s459 = sphi 0, %s461
      %s462 = sphi 0, %s459
      %s463 = sphi 0, %s462
      %s479 = sphi 0, %s463
      %s485 = sphi 0, %s487
      %s488 = sphi 0, %s485
      %s489 = sphi 0, %s488
      %s505 = sphi 0, %s489
      %s511 = sphi 0, %s513
      %s514 = sphi 0, %s511
      %s515 = sphi 0, %s514
      %s531 = sphi 0, %s515
      %s537 = sphi 0, %s539
      %s540 = sphi 0, %s537
      %s541 = sphi 0, %s540
      %s557 = sphi 0, %s541
      %s561 = sphi 0, %s561
      %s563 = sphi 0, %s561
      %s564 = sphi 0, %s563
      %s578 = sphi 0, %s564
      %s582 = sphi 0, %s582
      %s584 = sphi 0, %s582
      %s585 = sphi 0, %s584
      %s599 = sphi 0, %s585
      %s605 = sphi 0, %s607
      %s608 = sphi 0, %s605
      %s609 = sphi 0, %s608
      %s625 = sphi 0, %s609
    $region4: #{bert_wrapper_forward.1} parent=1 // loop_header_branch
      %34 = sbr.rel (%p32) target = $region8
    $region5: #{bert_wrapper_forward.1} parent=1 // loop_body
      %s36 = ssub.s32 %s31, 1
      %s37 = ssub.s32 %s31, 2
      %s44 = sadd.s32 1, %s39
      %p45 = scmp.ge.s32.totalorder %s44, 2
      %s46 = scalar_select %p45, 0, %s44
      %s47 = sadd.s32 1, %s38
      %s48 = scalar_select %p45, %s47, %s38
      %p49 = scmp.ge.s32.totalorder %s48, 2
      %s50 = scalar_select %p49, 0, %s48
      %s51 = ssub.s32 %s38, %s50
      %p52 = scmp.eq.s32.totalorder %s51, 0
      %s54 = sadd.s32 %s53, 1
      %s55 = scalar_select %p52, %s53, %s54
      %p58 = pneg %p52
      %p59 = scmp.eq.s32.totalorder %s31, 3
      %p60 = por %p58, %p59
      %p61 = scmp.ne.s32.totalorder %s53, %s56
      %p62 = scmp.eq.s32.totalorder %s31, 0
      %p63 = por %p61, %p62
      %p64 = scmp.ne.s32.totalorder %s53, %s56
      %p65 = scmp.eq.s32.totalorder %s36, 3
      %p66 = por %p64, %p65
      %p67 = scmp.ne.s32.totalorder %s56, %s57
      %p68 = scmp.eq.s32.totalorder %s36, 0
      %p69 = por %p67, %p68
      %p70 = scmp.ne.s32.totalorder %s56, %s57
      %p71 = scmp.eq.s32.totalorder %s37, 3
      %p72 = por %p70, %p71
      %p74 = scmp.ne.s32.totalorder %s57, %s73
      %p75 = scmp.eq.s32.totalorder %s37, 0
      %p76 = por %p74, %p75
      %s77 = ssub.s32 %s38, %s50
      %p78 = scmp.eq.s32.totalorder %s77, 0
      %s80 = sadd.s32 %s79, 1
      %s81 = scalar_select %p78, %s79, %s80
      %p84 = pneg %p78
      %p85 = scmp.eq.s32.totalorder %s31, 3
      %p86 = por %p84, %p85
      %p87 = scmp.ne.s32.totalorder %s79, %s82
      %p88 = scmp.eq.s32.totalorder %s31, 0
      %p89 = por %p87, %p88
      %p90 = scmp.ne.s32.totalorder %s79, %s82
      %p91 = scmp.eq.s32.totalorder %s36, 3
      %p92 = por %p90, %p91
      %p93 = scmp.ne.s32.totalorder %s82, %s83
      %p94 = scmp.eq.s32.totalorder %s36, 0
      %p95 = por %p93, %p94
      %p96 = scmp.ne.s32.totalorder %s82, %s83
      %p97 = scmp.eq.s32.totalorder %s37, 3
      %p98 = por %p96, %p97
      %p100 = scmp.ne.s32.totalorder %s83, %s99
      %p101 = scmp.eq.s32.totalorder %s37, 0
      %p102 = por %p100, %p101
      %s104 = sadd.s32 %s103, 1
      %p107 = scmp.eq.s32.totalorder %s31, 3
      %p108 = scmp.ne.s32.totalorder %s103, %s105
      %p109 = scmp.eq.s32.totalorder %s31, 0
      %p110 = por %p108, %p109
      %p111 = scmp.ne.s32.totalorder %s103, %s105
      %p112 = scmp.eq.s32.totalorder %s36, 3
      %p113 = por %p111, %p112
      %p114 = scmp.ne.s32.totalorder %s105, %s106
      %p115 = scmp.eq.s32.totalorder %s36, 0
      %p116 = por %p114, %p115
      %p117 = scmp.ne.s32.totalorder %s105, %s106
      %p118 = scmp.eq.s32.totalorder %s37, 3
      %p119 = por %p117, %p118
      %p121 = scmp.ne.s32.totalorder %s106, %s120
      %p122 = scmp.eq.s32.totalorder %s37, 0
      %p123 = por %p121, %p122
      %s125 = sadd.s32 %s124, 1
      %p128 = scmp.eq.s32.totalorder %s31, 3
      %p129 = scmp.ne.s32.totalorder %s124, %s126
      %p130 = scmp.eq.s32.totalorder %s31, 0
      %p131 = por %p129, %p130
      %p132 = scmp.ne.s32.totalorder %s124, %s126
      %p133 = scmp.eq.s32.totalorder %s36, 3
      %p134 = por %p132, %p133
      %p135 = scmp.ne.s32.totalorder %s126, %s127
      %p136 = scmp.eq.s32.totalorder %s36, 0
      %p137 = por %p135, %p136
      %p138 = scmp.ne.s32.totalorder %s126, %s127
      %p139 = scmp.eq.s32.totalorder %s37, 3
      %p140 = por %p138, %p139
      %p142 = scmp.ne.s32.totalorder %s127, %s141
      %p143 = scmp.eq.s32.totalorder %s37, 0
      %p144 = por %p142, %p143
      %s145 = ssub.s32 %s39, %s46
      %p146 = scmp.eq.s32.totalorder %s145, 0
      %s148 = sadd.s32 %s147, 1
      %s149 = scalar_select %p146, %s147, %s148
      %p152 = pneg %p146
      %p153 = scmp.eq.s32.totalorder %s31, 3
      %p154 = por %p152, %p153
      %p155 = scmp.ne.s32.totalorder %s147, %s150
      %p156 = scmp.eq.s32.totalorder %s31, 0
      %p157 = por %p155, %p156
      %p158 = scmp.ne.s32.totalorder %s147, %s150
      %p159 = scmp.eq.s32.totalorder %s36, 3
      %p160 = por %p158, %p159
      %p161 = scmp.ne.s32.totalorder %s150, %s151
      %p162 = scmp.eq.s32.totalorder %s36, 0
      %p163 = por %p161, %p162
      %p164 = scmp.ne.s32.totalorder %s150, %s151
      %p165 = scmp.eq.s32.totalorder %s37, 3
      %p166 = por %p164, %p165
      %p168 = scmp.ne.s32.totalorder %s151, %s167
      %p169 = scmp.eq.s32.totalorder %s37, 0
      %p170 = por %p168, %p169
      %s171 = ssub.s32 %s39, %s46
      %p172 = scmp.eq.s32.totalorder %s171, 0
      %s174 = sadd.s32 %s173, 1
      %s175 = scalar_select %p172, %s173, %s174
      %p178 = pneg %p172
      %p179 = scmp.eq.s32.totalorder %s31, 3
      %p180 = por %p178, %p179
      %p181 = scmp.ne.s32.totalorder %s173, %s176
      %p182 = scmp.eq.s32.totalorder %s31, 0
      %p183 = por %p181, %p182
      %p184 = scmp.ne.s32.totalorder %s173, %s176
      %p185 = scmp.eq.s32.totalorder %s36, 3
      %p186 = por %p184, %p185
      %p187 = scmp.ne.s32.totalorder %s176, %s177
      %p188 = scmp.eq.s32.totalorder %s36, 0
      %p189 = por %p187, %p188
      %p190 = scmp.ne.s32.totalorder %s176, %s177
      %p191 = scmp.eq.s32.totalorder %s37, 3
      %p192 = por %p190, %p191
      %p194 = scmp.ne.s32.totalorder %s177, %s193
      %p195 = scmp.eq.s32.totalorder %s37, 0
      %p196 = por %p194, %p195
      %s197 = ssub.s32 %s39, %s46
      %p198 = scmp.eq.s32.totalorder %s197, 0
      %s200 = sadd.s32 %s199, 1
      %s201 = scalar_select %p198, %s199, %s200
      %p204 = pneg %p198
      %p205 = scmp.eq.s32.totalorder %s31, 3
      %p206 = por %p204, %p205
      %p207 = scmp.ne.s32.totalorder %s199, %s202
      %p208 = scmp.eq.s32.totalorder %s31, 0
      %p209 = por %p207, %p208
      %p210 = scmp.ne.s32.totalorder %s199, %s202
      %p211 = scmp.eq.s32.totalorder %s36, 3
      %p212 = por %p210, %p211
      %p213 = scmp.ne.s32.totalorder %s202, %s203
      %p214 = scmp.eq.s32.totalorder %s36, 0
      %p215 = por %p213, %p214
      %p216 = scmp.ne.s32.totalorder %s202, %s203
      %p217 = scmp.eq.s32.totalorder %s37, 3
      %p218 = por %p216, %p217
      %p220 = scmp.ne.s32.totalorder %s203, %s219
      %p221 = scmp.eq.s32.totalorder %s37, 0
      %p222 = por %p220, %p221
      %s223 = ssub.s32 %s39, %s46
      %p224 = scmp.eq.s32.totalorder %s223, 0
      %s226 = sadd.s32 %s225, 1
      %s227 = scalar_select %p224, %s225, %s226
      %p230 = pneg %p224
      %p231 = scmp.eq.s32.totalorder %s31, 3
      %p232 = por %p230, %p231
      %p233 = scmp.ne.s32.totalorder %s225, %s228
      %p234 = scmp.eq.s32.totalorder %s31, 0
      %p235 = por %p233, %p234
      %p236 = scmp.ne.s32.totalorder %s225, %s228
      %p237 = scmp.eq.s32.totalorder %s36, 3
      %p238 = por %p236, %p237
      %p239 = scmp.ne.s32.totalorder %s228, %s229
      %p240 = scmp.eq.s32.totalorder %s36, 0
      %p241 = por %p239, %p240
      %p242 = scmp.ne.s32.totalorder %s228, %s229
      %p243 = scmp.eq.s32.totalorder %s37, 3
      %p244 = por %p242, %p243
      %p246 = scmp.ne.s32.totalorder %s229, %s245
      %p247 = scmp.eq.s32.totalorder %s37, 0
      %p248 = por %p246, %p247
      %s249 = ssub.s32 %s39, %s46
      %p250 = scmp.eq.s32.totalorder %s249, 0
      %s252 = sadd.s32 %s251, 1
      %s253 = scalar_select %p250, %s251, %s252
      %p256 = pneg %p250
      %p257 = scmp.eq.s32.totalorder %s31, 3
      %p258 = por %p256, %p257
      %p259 = scmp.ne.s32.totalorder %s251, %s254
      %p260 = scmp.eq.s32.totalorder %s31, 0
      %p261 = por %p259, %p260
      %p262 = scmp.ne.s32.totalorder %s251, %s254
      %p263 = scmp.eq.s32.totalorder %s36, 3
      %p264 = por %p262, %p263
      %p265 = scmp.ne.s32.totalorder %s254, %s255
      %p266 = scmp.eq.s32.totalorder %s36, 0
      %p267 = por %p265, %p266
      %p268 = scmp.ne.s32.totalorder %s254, %s255
      %p269 = scmp.eq.s32.totalorder %s37, 3
      %p270 = por %p268, %p269
      %p272 = scmp.ne.s32.totalorder %s255, %s271
      %p273 = scmp.eq.s32.totalorder %s37, 0
      %p274 = por %p272, %p273
      %s275 = ssub.s32 %s39, %s46
      %p276 = scmp.eq.s32.totalorder %s275, 0
      %s278 = sadd.s32 %s277, 1
      %s279 = scalar_select %p276, %s277, %s278
      %p282 = pneg %p276
      %p283 = scmp.eq.s32.totalorder %s31, 3
      %p284 = por %p282, %p283
      %p285 = scmp.ne.s32.totalorder %s277, %s280
      %p286 = scmp.eq.s32.totalorder %s31, 0
      %p287 = por %p285, %p286
      %p288 = scmp.ne.s32.totalorder %s277, %s280
      %p289 = scmp.eq.s32.totalorder %s36, 3
      %p290 = por %p288, %p289
      %p291 = scmp.ne.s32.totalorder %s280, %s281
      %p292 = scmp.eq.s32.totalorder %s36, 0
      %p293 = por %p291, %p292
      %p294 = scmp.ne.s32.totalorder %s280, %s281
      %p295 = scmp.eq.s32.totalorder %s37, 3
      %p296 = por %p294, %p295
      %p298 = scmp.ne.s32.totalorder %s281, %s297
      %p299 = scmp.eq.s32.totalorder %s37, 0
      %p300 = por %p298, %p299
      %s301 = ssub.s32 %s39, %s46
      %p302 = scmp.eq.s32.totalorder %s301, 0
      %s304 = sadd.s32 %s303, 1
      %s305 = scalar_select %p302, %s303, %s304
      %p308 = pneg %p302
      %p309 = scmp.eq.s32.totalorder %s31, 3
      %p310 = por %p308, %p309
      %p311 = scmp.ne.s32.totalorder %s303, %s306
      %p312 = scmp.eq.s32.totalorder %s31, 0
      %p313 = por %p311, %p312
      %p314 = scmp.ne.s32.totalorder %s303, %s306
      %p315 = scmp.eq.s32.totalorder %s36, 3
      %p316 = por %p314, %p315
      %p317 = scmp.ne.s32.totalorder %s306, %s307
      %p318 = scmp.eq.s32.totalorder %s36, 0
      %p319 = por %p317, %p318
      %p320 = scmp.ne.s32.totalorder %s306, %s307
      %p321 = scmp.eq.s32.totalorder %s37, 3
      %p322 = por %p320, %p321
      %p324 = scmp.ne.s32.totalorder %s307, %s323
      %p325 = scmp.eq.s32.totalorder %s37, 0
      %p326 = por %p324, %p325
      %s327 = ssub.s32 %s39, %s46
      %p328 = scmp.eq.s32.totalorder %s327, 0
      %s330 = sadd.s32 %s329, 1
      %s331 = scalar_select %p328, %s329, %s330
      %p334 = pneg %p328
      %p335 = scmp.eq.s32.totalorder %s31, 3
      %p336 = por %p334, %p335
      %p337 = scmp.ne.s32.totalorder %s329, %s332
      %p338 = scmp.eq.s32.totalorder %s31, 0
      %p339 = por %p337, %p338
      %p340 = scmp.ne.s32.totalorder %s329, %s332
      %p341 = scmp.eq.s32.totalorder %s36, 3
      %p342 = por %p340, %p341
      %p343 = scmp.ne.s32.totalorder %s332, %s333
      %p344 = scmp.eq.s32.totalorder %s36, 0
      %p345 = por %p343, %p344
      %p346 = scmp.ne.s32.totalorder %s332, %s333
      %p347 = scmp.eq.s32.totalorder %s37, 3
      %p348 = por %p346, %p347
      %p350 = scmp.ne.s32.totalorder %s333, %s349
      %p351 = scmp.eq.s32.totalorder %s37, 0
      %p352 = por %p350, %p351
      %s353 = ssub.s32 %s39, %s46
      %p354 = scmp.eq.s32.totalorder %s353, 0
      %s356 = sadd.s32 %s355, 1
      %s357 = scalar_select %p354, %s355, %s356
      %p360 = pneg %p354
      %p361 = scmp.eq.s32.totalorder %s31, 3
      %p362 = por %p360, %p361
      %p363 = scmp.ne.s32.totalorder %s355, %s358
      %p364 = scmp.eq.s32.totalorder %s31, 0
      %p365 = por %p363, %p364
      %p366 = scmp.ne.s32.totalorder %s355, %s358
      %p367 = scmp.eq.s32.totalorder %s36, 3
      %p368 = por %p366, %p367
      %p369 = scmp.ne.s32.totalorder %s358, %s359
      %p370 = scmp.eq.s32.totalorder %s36, 0
      %p371 = por %p369, %p370
      %p372 = scmp.ne.s32.totalorder %s358, %s359
      %p373 = scmp.eq.s32.totalorder %s37, 3
      %p374 = por %p372, %p373
      %p376 = scmp.ne.s32.totalorder %s359, %s375
      %p377 = scmp.eq.s32.totalorder %s37, 0
      %p378 = por %p376, %p377
      %s379 = ssub.s32 %s39, %s46
      %p380 = scmp.eq.s32.totalorder %s379, 0
      %s382 = sadd.s32 %s381, 1
      %s383 = scalar_select %p380, %s381, %s382
      %p386 = pneg %p380
      %p387 = scmp.eq.s32.totalorder %s31, 3
      %p388 = por %p386, %p387
      %p389 = scmp.ne.s32.totalorder %s381, %s384
      %p390 = scmp.eq.s32.totalorder %s31, 0
      %p391 = por %p389, %p390
      %p392 = scmp.ne.s32.totalorder %s381, %s384
      %p393 = scmp.eq.s32.totalorder %s36, 3
      %p394 = por %p392, %p393
      %p395 = scmp.ne.s32.totalorder %s384, %s385
      %p396 = scmp.eq.s32.totalorder %s36, 0
      %p397 = por %p395, %p396
      %p398 = scmp.ne.s32.totalorder %s384, %s385
      %p399 = scmp.eq.s32.totalorder %s37, 3
      %p400 = por %p398, %p399
      %p402 = scmp.ne.s32.totalorder %s385, %s401
      %p403 = scmp.eq.s32.totalorder %s37, 0
      %p404 = por %p402, %p403
      %s405 = ssub.s32 %s39, %s46
      %p406 = scmp.eq.s32.totalorder %s405, 0
      %s408 = sadd.s32 %s407, 1
      %s409 = scalar_select %p406, %s407, %s408
      %p412 = pneg %p406
      %p413 = scmp.eq.s32.totalorder %s31, 3
      %p414 = por %p412, %p413
      %p415 = scmp.ne.s32.totalorder %s407, %s410
      %p416 = scmp.eq.s32.totalorder %s31, 0
      %p417 = por %p415, %p416
      %p418 = scmp.ne.s32.totalorder %s407, %s410
      %p419 = scmp.eq.s32.totalorder %s36, 3
      %p420 = por %p418, %p419
      %p421 = scmp.ne.s32.totalorder %s410, %s411
      %p422 = scmp.eq.s32.totalorder %s36, 0
      %p423 = por %p421, %p422
      %p424 = scmp.ne.s32.totalorder %s410, %s411
      %p425 = scmp.eq.s32.totalorder %s37, 3
      %p426 = por %p424, %p425
      %p428 = scmp.ne.s32.totalorder %s411, %s427
      %p429 = scmp.eq.s32.totalorder %s37, 0
      %p430 = por %p428, %p429
      %s431 = ssub.s32 %s39, %s46
      %p432 = scmp.eq.s32.totalorder %s431, 0
      %s434 = sadd.s32 %s433, 1
      %s435 = scalar_select %p432, %s433, %s434
      %p438 = pneg %p432
      %p439 = scmp.eq.s32.totalorder %s31, 3
      %p440 = por %p438, %p439
      %p441 = scmp.ne.s32.totalorder %s433, %s436
      %p442 = scmp.eq.s32.totalorder %s31, 0
      %p443 = por %p441, %p442
      %p444 = scmp.ne.s32.totalorder %s433, %s436
      %p445 = scmp.eq.s32.totalorder %s36, 3
      %p446 = por %p444, %p445
      %p447 = scmp.ne.s32.totalorder %s436, %s437
      %p448 = scmp.eq.s32.totalorder %s36, 0
      %p449 = por %p447, %p448
      %p450 = scmp.ne.s32.totalorder %s436, %s437
      %p451 = scmp.eq.s32.totalorder %s37, 3
      %p452 = por %p450, %p451
      %p454 = scmp.ne.s32.totalorder %s437, %s453
      %p455 = scmp.eq.s32.totalorder %s37, 0
      %p456 = por %p454, %p455
      %s457 = ssub.s32 %s39, %s46
      %p458 = scmp.eq.s32.totalorder %s457, 0
      %s460 = sadd.s32 %s459, 1
      %s461 = scalar_select %p458, %s459, %s460
      %p464 = pneg %p458
      %p465 = scmp.eq.s32.totalorder %s31, 3
      %p466 = por %p464, %p465
      %p467 = scmp.ne.s32.totalorder %s459, %s462
      %p468 = scmp.eq.s32.totalorder %s31, 0
      %p469 = por %p467, %p468
      %p470 = scmp.ne.s32.totalorder %s459, %s462
      %p471 = scmp.eq.s32.totalorder %s36, 3
      %p472 = por %p470, %p471
      %p473 = scmp.ne.s32.totalorder %s462, %s463
      %p474 = scmp.eq.s32.totalorder %s36, 0
      %p475 = por %p473, %p474
      %p476 = scmp.ne.s32.totalorder %s462, %s463
      %p477 = scmp.eq.s32.totalorder %s37, 3
      %p478 = por %p476, %p477
      %p480 = scmp.ne.s32.totalorder %s463, %s479
      %p481 = scmp.eq.s32.totalorder %s37, 0
      %p482 = por %p480, %p481
      %s483 = ssub.s32 %s39, %s46
      %p484 = scmp.eq.s32.totalorder %s483, 0
      %s486 = sadd.s32 %s485, 1
      %s487 = scalar_select %p484, %s485, %s486
      %p490 = pneg %p484
      %p491 = scmp.eq.s32.totalorder %s31, 3
      %p492 = por %p490, %p491
      %p493 = scmp.ne.s32.totalorder %s485, %s488
      %p494 = scmp.eq.s32.totalorder %s31, 0
      %p495 = por %p493, %p494
      %p496 = scmp.ne.s32.totalorder %s485, %s488
      %p497 = scmp.eq.s32.totalorder %s36, 3
      %p498 = por %p496, %p497
      %p499 = scmp.ne.s32.totalorder %s488, %s489
      %p500 = scmp.eq.s32.totalorder %s36, 0
      %p501 = por %p499, %p500
      %p502 = scmp.ne.s32.totalorder %s488, %s489
      %p503 = scmp.eq.s32.totalorder %s37, 3
      %p504 = por %p502, %p503
      %p506 = scmp.ne.s32.totalorder %s489, %s505
      %p507 = scmp.eq.s32.totalorder %s37, 0
      %p508 = por %p506, %p507
      %s509 = ssub.s32 %s39, %s46
      %p510 = scmp.eq.s32.totalorder %s509, 0
      %s512 = sadd.s32 %s511, 1
      %s513 = scalar_select %p510, %s511, %s512
      %p516 = pneg %p510
      %p517 = scmp.eq.s32.totalorder %s31, 3
      %p518 = por %p516, %p517
      %p519 = scmp.ne.s32.totalorder %s511, %s514
      %p520 = scmp.eq.s32.totalorder %s31, 0
      %p521 = por %p519, %p520
      %p522 = scmp.ne.s32.totalorder %s511, %s514
      %p523 = scmp.eq.s32.totalorder %s36, 3
      %p524 = por %p522, %p523
      %p525 = scmp.ne.s32.totalorder %s514, %s515
      %p526 = scmp.eq.s32.totalorder %s36, 0
      %p527 = por %p525, %p526
      %p528 = scmp.ne.s32.totalorder %s514, %s515
      %p529 = scmp.eq.s32.totalorder %s37, 3
      %p530 = por %p528, %p529
      %p532 = scmp.ne.s32.totalorder %s515, %s531
      %p533 = scmp.eq.s32.totalorder %s37, 0
      %p534 = por %p532, %p533
      %s535 = ssub.s32 %s39, %s46
      %p536 = scmp.eq.s32.totalorder %s535, 0
      %s538 = sadd.s32 %s537, 1
      %s539 = scalar_select %p536, %s537, %s538
      %p542 = pneg %p536
      %p543 = scmp.eq.s32.totalorder %s31, 3
      %p544 = por %p542, %p543
      %p545 = scmp.ne.s32.totalorder %s537, %s540
      %p546 = scmp.eq.s32.totalorder %s31, 0
      %p547 = por %p545, %p546
      %p548 = scmp.ne.s32.totalorder %s537, %s540
      %p549 = scmp.eq.s32.totalorder %s36, 3
      %p550 = por %p548, %p549
      %p551 = scmp.ne.s32.totalorder %s540, %s541
      %p552 = scmp.eq.s32.totalorder %s36, 0
      %p553 = por %p551, %p552
      %p554 = scmp.ne.s32.totalorder %s540, %s541
      %p555 = scmp.eq.s32.totalorder %s37, 3
      %p556 = por %p554, %p555
      %p558 = scmp.ne.s32.totalorder %s541, %s557
      %p559 = scmp.eq.s32.totalorder %s37, 0
      %p560 = por %p558, %p559
      %s562 = sadd.s32 %s561, 1
      %p565 = scmp.eq.s32.totalorder %s31, 3
      %p566 = scmp.ne.s32.totalorder %s561, %s563
      %p567 = scmp.eq.s32.totalorder %s31, 0
      %p568 = por %p566, %p567
      %p569 = scmp.ne.s32.totalorder %s561, %s563
      %p570 = scmp.eq.s32.totalorder %s36, 3
      %p571 = por %p569, %p570
      %p572 = scmp.ne.s32.totalorder %s563, %s564
      %p573 = scmp.eq.s32.totalorder %s36, 0
      %p574 = por %p572, %p573
      %p575 = scmp.ne.s32.totalorder %s563, %s564
      %p576 = scmp.eq.s32.totalorder %s37, 3
      %p577 = por %p575, %p576
      %p579 = scmp.ne.s32.totalorder %s564, %s578
      %p580 = scmp.eq.s32.totalorder %s37, 0
      %p581 = por %p579, %p580
      %s583 = sadd.s32 %s582, 1
      %p586 = scmp.eq.s32.totalorder %s31, 3
      %p587 = scmp.ne.s32.totalorder %s582, %s584
      %p588 = scmp.eq.s32.totalorder %s31, 0
      %p589 = por %p587, %p588
      %p590 = scmp.ne.s32.totalorder %s582, %s584
      %p591 = scmp.eq.s32.totalorder %s36, 3
      %p592 = por %p590, %p591
      %p593 = scmp.ne.s32.totalorder %s584, %s585
      %p594 = scmp.eq.s32.totalorder %s36, 0
      %p595 = por %p593, %p594
      %p596 = scmp.ne.s32.totalorder %s584, %s585
      %p597 = scmp.eq.s32.totalorder %s37, 3
      %p598 = por %p596, %p597
      %p600 = scmp.ne.s32.totalorder %s585, %s599
      %p601 = scmp.eq.s32.totalorder %s37, 0
      %p602 = por %p600, %p601
      %s603 = ssub.s32 %s38, %s50
      %p604 = scmp.eq.s32.totalorder %s603, 0
      %s606 = sadd.s32 %s605, 1
      %s607 = scalar_select %p604, %s605, %s606
      %p610 = pneg %p604
      %p611 = scmp.eq.s32.totalorder %s31, 3
      %p612 = por %p610, %p611
      %p613 = scmp.ne.s32.totalorder %s605, %s608
      %p614 = scmp.eq.s32.totalorder %s31, 0
      %p615 = por %p613, %p614
      %p616 = scmp.ne.s32.totalorder %s605, %s608
      %p617 = scmp.eq.s32.totalorder %s36, 3
      %p618 = por %p616, %p617
      %p619 = scmp.ne.s32.totalorder %s608, %s609
      %p620 = scmp.eq.s32.totalorder %s36, 0
      %p621 = por %p619, %p620
      %p622 = scmp.ne.s32.totalorder %s608, %s609
      %p623 = scmp.eq.s32.totalorder %s37, 3
      %p624 = por %p622, %p623
      %p626 = scmp.ne.s32.totalorder %s609, %s625
      %p627 = scmp.eq.s32.totalorder %s37, 0
      %p628 = por %p626, %p627
      %p629 = scmp.le.s32.totalorder 1, %s31
      %p630 = scmp.lt.s32.totalorder %s31, 5
      %p631 = pnand %p629, %p630
      %p632 = pneg %p631
      // Predicated region
      $region9: #{bert_wrapper_forward.1} parent=5 // pred_check
        _
      $region10: #{bert_wrapper_forward.1} parent=5 // pred_check_branch
        %634 = sbr.rel (%p631) target = $region12
      $region11: #{bert_wrapper_forward.1} parent=5 // pred_region
        %s635 = ssub.s32 %s31, 1
        // Predicated region
        $region13: #{bert_wrapper_forward.1} parent=11 // pred_check
          %p636 = pneg %p116
        $region14: #{bert_wrapper_forward.1} parent=11 // pred_check_branch
          %638 = sbr.rel (%p636) target = $region16
        $region15: #{bert_wrapper_forward.1} parent=11 // pred_region
          _
        $region16: #{bert_wrapper_forward.1} parent=11 // pred_fallthru
          _
        // Predicated region
        $region17: #{bert_wrapper_forward.1} parent=11 // pred_check
          %p639 = pneg %p137
        $region18: #{bert_wrapper_forward.1} parent=11 // pred_check_branch
          %641 = sbr.rel (%p639) target = $region20
        $region19: #{bert_wrapper_forward.1} parent=11 // pred_region
          _
        $region20: #{bert_wrapper_forward.1} parent=11 // pred_fallthru
          _
        // Predicated region
        $region21: #{bert_wrapper_forward.1} parent=11 // pred_check
          %p642 = pneg %p574
        $region22: #{bert_wrapper_forward.1} parent=11 // pred_check_branch
          %644 = sbr.rel (%p642) target = $region24
        $region23: #{bert_wrapper_forward.1} parent=11 // pred_region
          _
        $region24: #{bert_wrapper_forward.1} parent=11 // pred_fallthru
          _
        // Predicated region
        $region25: #{bert_wrapper_forward.1} parent=11 // pred_check
          %p645 = pneg %p595
        $region26: #{bert_wrapper_forward.1} parent=11 // pred_check_branch
          %647 = sbr.rel (%p645) target = $region28
        $region27: #{bert_wrapper_forward.1} parent=11 // pred_region
          _
        $region28: #{bert_wrapper_forward.1} parent=11 // pred_fallthru
          _
      $region12: #{bert_wrapper_forward.1} parent=5 // pred_fallthru
        _
      %p648 = scmp.lt.s32.totalorder %s31, 4
      // Predicated region
      $region29: #{bert_wrapper_forward.1} parent=5 // pred_check
        %p649 = pneg %p648
      $region30: #{bert_wrapper_forward.1} parent=5 // pred_check_branch
        %651 = sbr.rel (%p649) target = $region32
      $region31: #{bert_wrapper_forward.1} parent=5 // pred_region
        // Predicated region
        $region33: #{bert_wrapper_forward.1} parent=31 // pred_check
          %p652 = pneg %p63
        $region34: #{bert_wrapper_forward.1} parent=31 // pred_check_branch
          %654 = sbr.rel (%p652) target = $region36
        $region35: #{bert_wrapper_forward.1} parent=31 // pred_region
          %p655 = scmp.lt.s32.totalorder %s38, 1
          %s656 = scalar_select %p655, %s38, 1
          %s657 = smul.addr %s656, 8
          %s658 = scalar_lea.vmem %s0, %s657
        $region36: #{bert_wrapper_forward.1} parent=31 // pred_fallthru
          _
        // Predicated region
        $region37: #{bert_wrapper_forward.1} parent=31 // pred_check
          %p659 = pneg %p89
        $region38: #{bert_wrapper_forward.1} parent=31 // pred_check_branch
          %661 = sbr.rel (%p659) target = $region40
        $region39: #{bert_wrapper_forward.1} parent=31 // pred_region
          %p662 = scmp.lt.s32.totalorder %s38, 1
          %s663 = scalar_select %p662, %s38, 1
          %s664 = scalar_lea.vmem %s1, %s663
        $region40: #{bert_wrapper_forward.1} parent=31 // pred_fallthru
          _
        // Predicated region
        $region41: #{bert_wrapper_forward.1} parent=31 // pred_check
          %p665 = pneg %p157
        $region42: #{bert_wrapper_forward.1} parent=31 // pred_check_branch
          %667 = sbr.rel (%p665) target = $region44
        $region43: #{bert_wrapper_forward.1} parent=31 // pred_region
          %p668 = scmp.lt.s32.totalorder %s39, 1
          %s669 = scalar_select %p668, %s39, 1
          %s670 = smul.addr %s669, 8
          %s671 = smul.addr %s670, 4
          %s672 = scalar_lea.vmem %s4, %s671
        $region44: #{bert_wrapper_forward.1} parent=31 // pred_fallthru
          _
        // Predicated region
        $region45: #{bert_wrapper_forward.1} parent=31 // pred_check
          %p673 = pneg %p183
        $region46: #{bert_wrapper_forward.1} parent=31 // pred_check_branch
          %675 = sbr.rel (%p673) target = $region48
        $region47: #{bert_wrapper_forward.1} parent=31 // pred_region
          %p676 = scmp.lt.s32.totalorder %s39, 1
          %s677 = scalar_select %p676, %s39, 1
          %s678 = smul.addr %s677, 8
          %s679 = smul.addr %s678, 4
          %s680 = scalar_lea.vmem %s5, %s679
        $region48: #{bert_wrapper_forward.1} parent=31 // pred_fallthru
          _
        // Predicated region
        $region49: #{bert_wrapper_forward.1} parent=31 // pred_check
          %p681 = pneg %p209
        $region50: #{bert_wrapper_forward.1} parent=31 // pred_check_branch
          %683 = sbr.rel (%p681) target = $region52
        $region51: #{bert_wrapper_forward.1} parent=31 // pred_region
          %p684 = scmp.lt.s32.totalorder %s39, 1
          %s685 = scalar_select %p684, %s39, 1
          %s686 = smul.addr %s685, 8
          %s687 = smul.addr %s686, 4
          %s688 = scalar_lea.vmem %s6, %s687
        $region52: #{bert_wrapper_forward.1} parent=31 // pred_fallthru
          _
        // Predicated region
        $region53: #{bert_wrapper_forward.1} parent=31 // pred_check
          %p689 = pneg %p235
        $region54: #{bert_wrapper_forward.1} parent=31 // pred_check_branch
          %691 = sbr.rel (%p689) target = $region56
        $region55: #{bert_wrapper_forward.1} parent=31 // pred_region
          %p692 = scmp.lt.s32.totalorder %s39, 1
          %s693 = scalar_select %p692, %s39, 1
          %s694 = smul.addr %s693, 2
          %s695 = scalar_lea.vmem %s7, %s694
        $region56: #{bert_wrapper_forward.1} parent=31 // pred_fallthru
          _
        // Predicated region
        $region57: #{bert_wrapper_forward.1} parent=31 // pred_check
          %p696 = pneg %p261
        $region58: #{bert_wrapper_forward.1} parent=31 // pred_check_branch
          %698 = sbr.rel (%p696) target = $region60
        $region59: #{bert_wrapper_forward.1} parent=31 // pred_region
          %p699 = scmp.lt.s32.totalorder %s39, 1
          %s700 = scalar_select %p699, %s39, 1
          %s701 = smul.addr %s700, 2
          %s702 = scalar_lea.vmem %s8, %s701
        $region60: #{bert_wrapper_forward.1} parent=31 // pred_fallthru
          _
        // Predicated region
        $region61: #{bert_wrapper_forward.1} parent=31 // pred_check
          %p703 = pneg %p287
        $region62: #{bert_wrapper_forward.1} parent=31 // pred_check_branch
          %705 = sbr.rel (%p703) target = $region64
        $region63: #{bert_wrapper_forward.1} parent=31 // pred_region
          %p706 = scmp.lt.s32.totalorder %s39, 1
          %s707 = scalar_select %p706, %s39, 1
          %s708 = smul.addr %s707, 2
          %s709 = scalar_lea.vmem %s9, %s708
        $region64: #{bert_wrapper_forward.1} parent=31 // pred_fallthru
          _
        // Predicated region
        $region65: #{bert_wrapper_forward.1} parent=31 // pred_check
          %p710 = pneg %p313
        $region66: #{bert_wrapper_forward.1} parent=31 // pred_check_branch
          %712 = sbr.rel (%p710) target = $region68
        $region67: #{bert_wrapper_forward.1} parent=31 // pred_region
          %p713 = scmp.lt.s32.totalorder %s39, 1
          %s714 = scalar_select %p713, %s39, 1
          %s715 = smul.addr %s714, 4
          %s716 = smul.addr %s715, 4
          %s717 = scalar_lea.vmem %s10, %s716
        $region68: #{bert_wrapper_forward.1} parent=31 // pred_fallthru
          _
        // Predicated region
        $region69: #{bert_wrapper_forward.1} parent=31 // pred_check
          %p718 = pneg %p339
        $region70: #{bert_wrapper_forward.1} parent=31 // pred_check_branch
          %720 = sbr.rel (%p718) target = $region72
        $region71: #{bert_wrapper_forward.1} parent=31 // pred_region
          %p721 = scmp.lt.s32.totalorder %s39, 1
          %s722 = scalar_select %p721, %s39, 1
          %s723 = scalar_lea.vmem %s11, %s722
        $region72: #{bert_wrapper_forward.1} parent=31 // pred_fallthru
          _
        // Predicated region
        $region73: #{bert_wrapper_forward.1} parent=31 // pred_check
          %p724 = pneg %p365
        $region74: #{bert_wrapper_forward.1} parent=31 // pred_check_branch
          %726 = sbr.rel (%p724) target = $region76
        $region75: #{bert_wrapper_forward.1} parent=31 // pred_region
          %p727 = scmp.lt.s32.totalorder %s39, 1
          %s728 = scalar_select %p727, %s39, 1
          %s729 = scalar_lea.vmem %s12, %s728
        $region76: #{bert_wrapper_forward.1} parent=31 // pred_fallthru
          _
        // Predicated region
        $region77: #{bert_wrapper_forward.1} parent=31 // pred_check
          %p730 = pneg %p391
        $region78: #{bert_wrapper_forward.1} parent=31 // pred_check_branch
          %732 = sbr.rel (%p730) target = $region80
        $region79: #{bert_wrapper_forward.1} parent=31 // pred_region
          %p733 = scmp.lt.s32.totalorder %s39, 1
          %s734 = scalar_select %p733, %s39, 1
          %s735 = scalar_lea.vmem %s13, %s734
        $region80: #{bert_wrapper_forward.1} parent=31 // pred_fallthru
          _
        // Predicated region
        $region81: #{bert_wrapper_forward.1} parent=31 // pred_check
          %p736 = pneg %p417
        $region82: #{bert_wrapper_forward.1} parent=31 // pred_check_branch
          %738 = sbr.rel (%p736) target = $region84
        $region83: #{bert_wrapper_forward.1} parent=31 // pred_region
          %p739 = scmp.lt.s32.totalorder %s39, 1
          %s740 = scalar_select %p739, %s39, 1
          %s741 = smul.addr %s740, 4
          %s742 = smul.addr %s741, 4
          %s743 = scalar_lea.vmem %s14, %s742
        $region84: #{bert_wrapper_forward.1} parent=31 // pred_fallthru
          _
        // Predicated region
        $region85: #{bert_wrapper_forward.1} parent=31 // pred_check
          %p744 = pneg %p443
        $region86: #{bert_wrapper_forward.1} parent=31 // pred_check_branch
          %746 = sbr.rel (%p744) target = $region88
        $region87: #{bert_wrapper_forward.1} parent=31 // pred_region
          %p747 = scmp.lt.s32.totalorder %s39, 1
          %s748 = scalar_select %p747, %s39, 1
          %s749 = scalar_lea.vmem %s15, %s748
        $region88: #{bert_wrapper_forward.1} parent=31 // pred_fallthru
          _
        // Predicated region
        $region89: #{bert_wrapper_forward.1} parent=31 // pred_check
          %p750 = pneg %p469
        $region90: #{bert_wrapper_forward.1} parent=31 // pred_check_branch
          %752 = sbr.rel (%p750) target = $region92
        $region91: #{bert_wrapper_forward.1} parent=31 // pred_region
          %p753 = scmp.lt.s32.totalorder %s39, 1
          %s754 = scalar_select %p753, %s39, 1
          %s755 = smul.addr %s754, 8
          %s756 = smul.addr %s755, 4
          %s757 = scalar_lea.vmem %s16, %s756
        $region92: #{bert_wrapper_forward.1} parent=31 // pred_fallthru
          _
        // Predicated region
        $region93: #{bert_wrapper_forward.1} parent=31 // pred_check
          %p758 = pneg %p495
        $region94: #{bert_wrapper_forward.1} parent=31 // pred_check_branch
          %760 = sbr.rel (%p758) target = $region96
        $region95: #{bert_wrapper_forward.1} parent=31 // pred_region
          %p761 = scmp.lt.s32.totalorder %s39, 1
          %s762 = scalar_select %p761, %s39, 1
          %s763 = scalar_lea.vmem %s17, %s762
        $region96: #{bert_wrapper_forward.1} parent=31 // pred_fallthru
          _
        // Predicated region
        $region97: #{bert_wrapper_forward.1} parent=31 // pred_check
          %p764 = pneg %p521
        $region98: #{bert_wrapper_forward.1} parent=31 // pred_check_branch
          %766 = sbr.rel (%p764) target = $region100
        $region99: #{bert_wrapper_forward.1} parent=31 // pred_region
          %p767 = scmp.lt.s32.totalorder %s39, 1
          %s768 = scalar_select %p767, %s39, 1
          %s769 = scalar_lea.vmem %s18, %s768
        $region100: #{bert_wrapper_forward.1} parent=31 // pred_fallthru
          _
        // Predicated region
        $region101: #{bert_wrapper_forward.1} parent=31 // pred_check
          %p770 = pneg %p547
        $region102: #{bert_wrapper_forward.1} parent=31 // pred_check_branch
          %772 = sbr.rel (%p770) target = $region104
        $region103: #{bert_wrapper_forward.1} parent=31 // pred_region
          %p773 = scmp.lt.s32.totalorder %s39, 1
          %s774 = scalar_select %p773, %s39, 1
          %s775 = scalar_lea.vmem %s19, %s774
        $region104: #{bert_wrapper_forward.1} parent=31 // pred_fallthru
          _
      $region32: #{bert_wrapper_forward.1} parent=5 // pred_fallthru
        _
      %p776 = scmp.le.s32.totalorder 1, %s31
      %p777 = scmp.lt.s32.totalorder %s31, 5
      %p778 = pnand %p776, %p777
      %p779 = pneg %p778
      // Predicated region
      $region105: #{bert_wrapper_forward.1} parent=5 // pred_check
        _
      $region106: #{bert_wrapper_forward.1} parent=5 // pred_check_branch
        %781 = sbr.rel (%p778) target = $region108
      $region107: #{bert_wrapper_forward.1} parent=5 // pred_region
        %s782 = ssub.s32 %s31, 1
        %p783 = scmp.lt.s32.totalorder %s40, 1
        %s784 = scalar_select %p783, %s40, 1
        %s785 = smul.addr %s784, 8
        %s786 = scalar_lea.vmem %s0, %s785
        %p787 = pneg %p69
        %p788 = pneg %p66
        %p789 = scmp.lt.s32.totalorder %s40, 1
        %s790 = scalar_select %p789, %s40, 1
        %s791 = scalar_lea.vmem %s1, %s790
        %p792 = pneg %p95
        %p793 = pneg %p92
        %p794 = pneg %p116
        %p795 = pneg %p113
        %p796 = pneg %p137
        %p797 = pneg %p134
        %p798 = scmp.lt.s32.totalorder %s41, 1
        %s799 = scalar_select %p798, %s41, 1
        %s800 = smul.addr %s799, 8
        %s801 = smul.addr %s800, 4
        %s802 = scalar_lea.vmem %s4, %s801
        %p803 = pneg %p163
        %p804 = pneg %p160
        %p805 = scmp.lt.s32.totalorder %s41, 1
        %s806 = scalar_select %p805, %s41, 1
        %s807 = smul.addr %s806, 8
        %s808 = smul.addr %s807, 4
        %s809 = scalar_lea.vmem %s5, %s808
        %p810 = pneg %p189
        %p811 = pneg %p186
        %p812 = scmp.lt.s32.totalorder %s41, 1
        %s813 = scalar_select %p812, %s41, 1
        %s814 = smul.addr %s813, 8
        %s815 = smul.addr %s814, 4
        %s816 = scalar_lea.vmem %s6, %s815
        %p817 = pneg %p215
        %p818 = pneg %p212
        %p819 = scmp.lt.s32.totalorder %s41, 1
        %s820 = scalar_select %p819, %s41, 1
        %s821 = smul.addr %s820, 2
        %s822 = scalar_lea.vmem %s7, %s821
        %p823 = pneg %p241
        %p824 = pneg %p238
        %p825 = scmp.lt.s32.totalorder %s41, 1
        %s826 = scalar_select %p825, %s41, 1
        %s827 = smul.addr %s826, 2
        %s828 = scalar_lea.vmem %s8, %s827
        %p829 = pneg %p267
        %p830 = pneg %p264
        %p831 = scmp.lt.s32.totalorder %s41, 1
        %s832 = scalar_select %p831, %s41, 1
        %s833 = smul.addr %s832, 2
        %s834 = scalar_lea.vmem %s9, %s833
        %p835 = pneg %p293
        %p836 = pneg %p290
        %p837 = scmp.lt.s32.totalorder %s41, 1
        %s838 = scalar_select %p837, %s41, 1
        %s839 = smul.addr %s838, 4
        %s840 = smul.addr %s839, 4
        %s841 = scalar_lea.vmem %s10, %s840
        %p842 = pneg %p319
        %p843 = pneg %p316
        %p844 = scmp.lt.s32.totalorder %s41, 1
        %s845 = scalar_select %p844, %s41, 1
        %s846 = scalar_lea.vmem %s11, %s845
        %p847 = pneg %p345
        %p848 = pneg %p342
        %p849 = scmp.lt.s32.totalorder %s41, 1
        %s850 = scalar_select %p849, %s41, 1
        %s851 = scalar_lea.vmem %s12, %s850
        %p852 = pneg %p371
        %p853 = pneg %p368
        %p854 = scmp.lt.s32.totalorder %s41, 1
        %s855 = scalar_select %p854, %s41, 1
        %s856 = scalar_lea.vmem %s13, %s855
        %p857 = pneg %p397
        %p858 = pneg %p394
        %p859 = scmp.lt.s32.totalorder %s41, 1
        %s860 = scalar_select %p859, %s41, 1
        %s861 = smul.addr %s860, 4
        %s862 = smul.addr %s861, 4
        %s863 = scalar_lea.vmem %s14, %s862
        %p864 = pneg %p423
        %p865 = pneg %p420
        %p866 = scmp.lt.s32.totalorder %s41, 1
        %s867 = scalar_select %p866, %s41, 1
        %s868 = scalar_lea.vmem %s15, %s867
        %p869 = pneg %p449
        %p870 = pneg %p446
        %p871 = scmp.lt.s32.totalorder %s41, 1
        %s872 = scalar_select %p871, %s41, 1
        %s873 = smul.addr %s872, 8
        %s874 = smul.addr %s873, 4
        %s875 = scalar_lea.vmem %s16, %s874
        %p876 = pneg %p475
        %p877 = pneg %p472
        %p878 = scmp.lt.s32.totalorder %s41, 1
        %s879 = scalar_select %p878, %s41, 1
        %s880 = scalar_lea.vmem %s17, %s879
        %p881 = pneg %p501
        %p882 = pneg %p498
        %p883 = scmp.lt.s32.totalorder %s41, 1
        %s884 = scalar_select %p883, %s41, 1
        %s885 = scalar_lea.vmem %s18, %s884
        %p886 = pneg %p527
        %p887 = pneg %p524
        %p888 = scmp.lt.s32.totalorder %s41, 1
        %s889 = scalar_select %p888, %s41, 1
        %s890 = scalar_lea.vmem %s19, %s889
        %p891 = pneg %p553
        %p892 = pneg %p550
        %p893 = pneg %p574
        %p894 = pneg %p571
        %p895 = pneg %p595
        %p896 = pneg %p592
        %p897 = pneg %p621
        %p898 = pneg %p618
        %s899 = sand.u32 %s608, 1
        %s900 = scalar_lea.sflag [#allocation4], %s899
        %s901 = sand.u32 %s608, 1
        %s902 = scalar_lea.vmem [#allocation3], %s901
        %p903 = scmp.lt.s32.totalorder %s40, 1
        %s904 = scalar_select %p903, %s40, 1
        %s905 = smul.addr %s904, 8
        %s906 = scalar_lea.vmem %s0, %s905
        %p907 = scmp.lt.s32.totalorder %s40, 1
        %s908 = scalar_select %p907, %s40, 1
        %s909 = scalar_lea.vmem %s1, %s908
        %p910 = scmp.lt.s32.totalorder %s41, 1
        %s911 = scalar_select %p910, %s41, 1
        %s912 = smul.addr %s911, 8
        %s913 = smul.addr %s912, 4
        %s914 = scalar_lea.vmem %s4, %s913
        %p915 = scmp.lt.s32.totalorder %s41, 1
        %s916 = scalar_select %p915, %s41, 1
        %s917 = smul.addr %s916, 8
        %s918 = smul.addr %s917, 4
        %s919 = scalar_lea.vmem %s5, %s918
        %p920 = scmp.lt.s32.totalorder %s41, 1
        %s921 = scalar_select %p920, %s41, 1
        %s922 = smul.addr %s921, 8
        %s923 = smul.addr %s922, 4
        %s924 = scalar_lea.vmem %s6, %s923
        %p925 = scmp.lt.s32.totalorder %s41, 1
        %s926 = scalar_select %p925, %s41, 1
        %s927 = smul.addr %s926, 2
        %s928 = scalar_lea.vmem %s7, %s927
        %p929 = scmp.lt.s32.totalorder %s41, 1
        %s930 = scalar_select %p929, %s41, 1
        %s931 = smul.addr %s930, 2
        %s932 = scalar_lea.vmem %s8, %s931
        %p933 = scmp.lt.s32.totalorder %s41, 1
        %s934 = scalar_select %p933, %s41, 1
        %s935 = smul.addr %s934, 2
        %s936 = scalar_lea.vmem %s9, %s935
        %p937 = scmp.lt.s32.totalorder %s41, 1
        %s938 = scalar_select %p937, %s41, 1
        %s939 = smul.addr %s938, 4
        %s940 = smul.addr %s939, 4
        %s941 = scalar_lea.vmem %s10, %s940
        %p942 = scmp.lt.s32.totalorder %s41, 1
        %s943 = scalar_select %p942, %s41, 1
        %s944 = scalar_lea.vmem %s11, %s943
        %p945 = scmp.lt.s32.totalorder %s41, 1
        %s946 = scalar_select %p945, %s41, 1
        %s947 = scalar_lea.vmem %s12, %s946
        %p948 = scmp.lt.s32.totalorder %s41, 1
        %s949 = scalar_select %p948, %s41, 1
        %s950 = scalar_lea.vmem %s13, %s949
        %p951 = scmp.lt.s32.totalorder %s41, 1
        %s952 = scalar_select %p951, %s41, 1
        %s953 = smul.addr %s952, 4
        %s954 = smul.addr %s953, 4
        %s955 = scalar_lea.vmem %s14, %s954
        %p956 = scmp.lt.s32.totalorder %s41, 1
        %s957 = scalar_select %p956, %s41, 1
        %s958 = scalar_lea.vmem %s15, %s957
        %p959 = scmp.lt.s32.totalorder %s41, 1
        %s960 = scalar_select %p959, %s41, 1
        %s961 = smul.addr %s960, 8
        %s962 = smul.addr %s961, 4
        %s963 = scalar_lea.vmem %s16, %s962
        %p964 = scmp.lt.s32.totalorder %s41, 1
        %s965 = scalar_select %p964, %s41, 1
        %s966 = scalar_lea.vmem %s17, %s965
        %p967 = scmp.lt.s32.totalorder %s41, 1
        %s968 = scalar_select %p967, %s41, 1
        %s969 = scalar_lea.vmem %s18, %s968
        %p970 = scmp.lt.s32.totalorder %s41, 1
        %s971 = scalar_select %p970, %s41, 1
        %s972 = scalar_lea.vmem %s19, %s971
        %p974 = scmp.eq.s32.totalorder %s41, 0
        // Predicated region
        $region109: #{bert_wrapper_forward.1} parent=107 // pred_check
          %p975 = pneg %p974
        $region110: #{bert_wrapper_forward.1} parent=107 // pred_check_branch
          %977 = sbr.rel (%p975) target = $region112
        $region111: #{bert_wrapper_forward.1} parent=107 // pred_region
          %v978 = vld [vmem:[%s906] sm:$0xff]
          %v979 = vld [vmem:[%s2] sm:$0x1]
          %v980 = vld [vmem:[%s3] sm:$0x1]
          %vm981 = vcmask 261120
          %v982 = vsel %vm981, %v978, 0.0
          %983 = vadd.xlane.f32.xlu0 %v982
          %v984 = vpop.xlane.xlu0 %983
          %v985 = vrcp.pop 32.0
          %v986 = vmul.f32 32.0, %v985
          %v987 = vsub.f32 1.0, %v986
          %v988 = vmul.f32 %v985, %v987
          %v989 = vadd.f32 %v985, %v988
          %vm990 = vweird.f32 %v985
          %v991 = vsel %vm990, %v985, %v989
          %v992 = vmul.f32 %v984, %v991
          %v993 = vsub.f32 %v978, %v992
          %v994 = vmul.f32 %v993, %v993
          %v995 = vsel %vm981, %v994, 0.0
          %996 = vadd.xlane.f32.xlu0 %v995
          %v997 = vpop.xlane.xlu0 %996
          %v998 = vmul.f32 %v997, %v991
          %v999 = vadd.f32 %v998, 1e-12
          %v1000 = vrsqrt.pop %v999
          %v1001 = vmul.f32 %v1000, %v999
          %v1002 = vmul.f32 %v1001, %v1000
          %v1003 = vmul.f32 0.5, %v1002
          %v1004 = vsub.f32 1.5, %v1003
          %v1005 = vmul.f32 %v1000, %v1004
          %vm1006 = vweird.f32 %v999
          %vm1007 = vweird.f32 %v1000
          %vm1008 = vmor %vm1006, %vm1007
          %v1009 = vsel %vm1008, %v1000, %v1005
          %v1010 = vmul.f32 %v993, %v1009
          %v1012 = vperm.slane %v979, 0
          %v1014 = vmul.f32 %v1010, %v1012
          %v1016 = vperm.slane %v980, 0
          %v1018 = vadd.f32 %v1014, %v1016
          %1019 = vst.msk [vmem:[#allocation2] sm:$0xff] %vm981, %v1018
        $region112: #{bert_wrapper_forward.1} parent=107 // pred_fallthru
          _
        %v1020 = vld [vmem:[#allocation2] sm:$0xff]
        %v1021 = vld [vmem:[%s909] sm:$0x1]
        %v1022 = vpack.c.bf16 %v1020, %v1020
        %v1023 = vld [vmem:[%s914] sm:$0xf]
        %v1024 = vld [vmem:[%s914 + $0x4] sm:$0xf]
        %v1025 = vld [vmem:[%s914 + $0x8] sm:$0xf]
        %v1026 = vld [vmem:[%s914 + $0xc] sm:$0xf]
        %v1027 = vld [vmem:[%s914 + $0x10] sm:$0xf]
        %v1028 = vld [vmem:[%s914 + $0x14] sm:$0xf]
        %v1029 = vld [vmem:[%s914 + $0x18] sm:$0xf]
        %v1030 = vld [vmem:[%s914 + $0x1c] sm:$0xf]
        %v1031 = vld [vmem:[%s928] sm:$0x1]
        %v1032 = vld [vmem:[%s928 + $0x1] sm:$0x1]
        %v1035 = vperm.slane %v1031, 0
        %v1036 = vperm.slane %v1032, 0
        %v1043 = vunpack.c.l.b16 %v1023
        %v1044 = vunpack.c.l.b16 %v1024
        %v1045 = vunpack.c.l.b16 %v1025
        %v1046 = vunpack.c.l.b16 %v1026
        %v1047 = vpack.c.b16 %v1044, %v1043
        %v1048 = vpack.c.b16 %v1046, %v1045
        %vm1051 = vcmask 261120
        %v1053 = vsel %vm1051, %v1022, 0
        %1055 = vmatpush.bf16.msra.mxu0 0
        %1056 = vmatpush.bf16.msra.mxu0 0
        %1057 = vmatpush.bf16.msra.mxu0 0
        %1058 = vmatpush.bf16.msra.mxu0 0
        %1059 = vmatpush.bf16.msra.mxu0 0
        %1060 = vmatpush.bf16.msra.mxu0 0
        %1061 = vmatpush.bf16.msra.mxu0 %v1048
        %1062 = vmatpush.bf16.msra.mxu0 %v1047
        %1063 = vmatmul.bf16.gmra.mxu0 %v1053
        %v1064 = vpop.f32.mrf.mxu0
        %v1065 = vadd.f32 %v1035, %v1064
        %v1066 = vpop.f32.mrf.mxu0
        %1067 = vdwg.mxu0
        %v1072 = vunpack.c.l.b16 %v1027
        %v1073 = vunpack.c.l.b16 %v1028
        %v1074 = vunpack.c.l.b16 %v1029
        %v1075 = vunpack.c.l.b16 %v1030
        %v1076 = vpack.c.b16 %v1073, %v1072
        %v1077 = vpack.c.b16 %v1075, %v1074
        %1080 = vmatpush.bf16.msra.mxu0 0
        %1081 = vmatpush.bf16.msra.mxu0 0
        %1082 = vmatpush.bf16.msra.mxu0 0
        %1083 = vmatpush.bf16.msra.mxu0 0
        %1084 = vmatpush.bf16.msra.mxu0 0
        %1085 = vmatpush.bf16.msra.mxu0 0
        %1086 = vmatpush.bf16.msra.mxu0 %v1077
        %1087 = vmatpush.bf16.msra.mxu0 %v1076
        %1088 = vmatmul.bf16.gmra.mxu0 %v1053
        %v1089 = vpop.f32.mrf.mxu0
        %v1090 = vadd.f32 %v1036, %v1089
        %v1091 = vpop.f32.mrf.mxu0
        %1092 = vdwg.mxu0
        %v1093 = vld [vmem:[%s919] sm:$0xf]
        %v1094 = vld [vmem:[%s919 + $0x4] sm:$0xf]
        %v1095 = vld [vmem:[%s919 + $0x8] sm:$0xf]
        %v1096 = vld [vmem:[%s919 + $0xc] sm:$0xf]
        %v1097 = vld [vmem:[%s919 + $0x10] sm:$0xf]
        %v1098 = vld [vmem:[%s919 + $0x14] sm:$0xf]
        %v1099 = vld [vmem:[%s919 + $0x18] sm:$0xf]
        %v1100 = vld [vmem:[%s919 + $0x1c] sm:$0xf]
        %v1101 = vld [vmem:[%s932] sm:$0x1]
        %v1102 = vld [vmem:[%s932 + $0x1] sm:$0x1]
        %v1105 = vperm.slane %v1101, 0
        %v1106 = vperm.slane %v1102, 0
        %v1113 = vunpack.c.l.b16 %v1093
        %v1114 = vunpack.c.l.b16 %v1094
        %v1115 = vunpack.c.l.b16 %v1095
        %v1116 = vunpack.c.l.b16 %v1096
        %v1117 = vpack.c.b16 %v1114, %v1113
        %v1118 = vpack.c.b16 %v1116, %v1115
        %1121 = vmatpush.bf16.msra.mxu0 0
        %1122 = vmatpush.bf16.msra.mxu0 0
        %1123 = vmatpush.bf16.msra.mxu0 0
        %1124 = vmatpush.bf16.msra.mxu0 0
        %1125 = vmatpush.bf16.msra.mxu0 0
        %1126 = vmatpush.bf16.msra.mxu0 0
        %1127 = vmatpush.bf16.msra.mxu0 %v1118
        %1128 = vmatpush.bf16.msra.mxu0 %v1117
        %1129 = vmatmul.bf16.gmra.mxu0 %v1053
        %v1130 = vpop.f32.mrf.mxu0
        %v1131 = vadd.f32 %v1105, %v1130
        %v1132 = vpop.f32.mrf.mxu0
        %1133 = vdwg.mxu0
        %v1138 = vunpack.c.l.b16 %v1097
        %v1139 = vunpack.c.l.b16 %v1098
        %v1140 = vunpack.c.l.b16 %v1099
        %v1141 = vunpack.c.l.b16 %v1100
        %v1142 = vpack.c.b16 %v1139, %v1138
        %v1143 = vpack.c.b16 %v1141, %v1140
        %1146 = vmatpush.bf16.msra.mxu0 0
        %1147 = vmatpush.bf16.msra.mxu0 0
        %1148 = vmatpush.bf16.msra.mxu0 0
        %1149 = vmatpush.bf16.msra.mxu0 0
        %1150 = vmatpush.bf16.msra.mxu0 0
        %1151 = vmatpush.bf16.msra.mxu0 0
        %1152 = vmatpush.bf16.msra.mxu0 %v1143
        %1153 = vmatpush.bf16.msra.mxu0 %v1142
        %1154 = vmatmul.bf16.gmra.mxu0 %v1053
        %v1155 = vpop.f32.mrf.mxu0
        %v1156 = vadd.f32 %v1106, %v1155
        %v1157 = vpop.f32.mrf.mxu0
        %1158 = vdwg.mxu0
        %v1159 = vld [vmem:[%s924] sm:$0xf]
        %v1160 = vld [vmem:[%s924 + $0x4] sm:$0xf]
        %v1161 = vld [vmem:[%s924 + $0x8] sm:$0xf]
        %v1162 = vld [vmem:[%s924 + $0xc] sm:$0xf]
        %v1163 = vld [vmem:[%s924 + $0x10] sm:$0xf]
        %v1164 = vld [vmem:[%s924 + $0x14] sm:$0xf]
        %v1165 = vld [vmem:[%s924 + $0x18] sm:$0xf]
        %v1166 = vld [vmem:[%s924 + $0x1c] sm:$0xf]
        %v1167 = vld [vmem:[%s936] sm:$0x1]
        %v1168 = vld [vmem:[%s936 + $0x1] sm:$0x1]
        %v1171 = vperm.slane %v1167, 0
        %v1172 = vperm.slane %v1168, 0
        %v1179 = vunpack.c.l.b16 %v1159
        %v1180 = vunpack.c.l.b16 %v1160
        %v1181 = vunpack.c.l.b16 %v1161
        %v1182 = vunpack.c.l.b16 %v1162
        %v1183 = vpack.c.b16 %v1180, %v1179
        %v1184 = vpack.c.b16 %v1182, %v1181
        %1187 = vmatpush.bf16.msra.mxu0 0
        %1188 = vmatpush.bf16.msra.mxu0 0
        %1189 = vmatpush.bf16.msra.mxu0 0
        %1190 = vmatpush.bf16.msra.mxu0 0
        %1191 = vmatpush.bf16.msra.mxu0 0
        %1192 = vmatpush.bf16.msra.mxu0 0
        %1193 = vmatpush.bf16.msra.mxu0 %v1184
        %1194 = vmatpush.bf16.msra.mxu0 %v1183
        %1195 = vmatmul.bf16.gmra.mxu0 %v1053
        %v1196 = vpop.f32.mrf.mxu0
        %v1197 = vadd.f32 %v1171, %v1196
        %v1198 = vpop.f32.mrf.mxu0
        %1199 = vdwg.mxu0
        %v1204 = vunpack.c.l.b16 %v1163
        %v1205 = vunpack.c.l.b16 %v1164
        %v1206 = vunpack.c.l.b16 %v1165
        %v1207 = vunpack.c.l.b16 %v1166
        %v1208 = vpack.c.b16 %v1205, %v1204
        %v1209 = vpack.c.b16 %v1207, %v1206
        %1212 = vmatpush.bf16.msra.mxu0 0
        %1213 = vmatpush.bf16.msra.mxu0 0
        %1214 = vmatpush.bf16.msra.mxu0 0
        %1215 = vmatpush.bf16.msra.mxu0 0
        %1216 = vmatpush.bf16.msra.mxu0 0
        %1217 = vmatpush.bf16.msra.mxu0 0
        %1218 = vmatpush.bf16.msra.mxu0 %v1209
        %1219 = vmatpush.bf16.msra.mxu0 %v1208
        %1220 = vmatmul.bf16.gmra.mxu0 %v1053
        %v1221 = vpop.f32.mrf.mxu0
        %v1222 = vadd.f32 %v1172, %v1221
        %v1223 = vpop.f32.mrf.mxu0
        %1224 = vdwg.mxu0
        %v1225 = vpack.c.bf16 %v1065, %v1065
        %v1226 = vpack.c.bf16 %v1090, %v1090
        %v1227 = vpack.c.bf16 %v1131, %v1131
        %v1228 = vpack.c.bf16 %v1156, %v1156
        %vm1229 = vcmask 130048
        %v1231 = vsel %vm1229, %v1225, 0
        %v1234 = vsel %vm1229, %v1227, 0
        %1236 = vmatpush.bf16.xpose.msra.mxu0 0
        %1237 = vmatpush.bf16.xpose.msra.mxu0 0
        %1238 = vmatpush.bf16.xpose.msra.mxu0 0
        %1239 = vmatpush.bf16.xpose.msra.mxu0 0
        %1240 = vmatpush.bf16.xpose.msra.mxu0 0
        %1241 = vmatpush.bf16.xpose.msra.mxu0 0
        %1242 = vmatpush.bf16.xpose.msra.mxu0 0
        %1243 = vmatpush.bf16.xpose.msra.mxu0 %v1234
        %1244 = vmatmul.bf16.gmra.mxu0 %v1231
        %v1245 = vpop.f32.mrf.mxu0
        %v1246 = vadd.f32 0.0, %v1245
        %v1247 = vpop.f32.mrf.mxu0
        %1248 = vdwg.mxu0
        %v1250 = vsel %vm1229, %v1226, 0
        %v1253 = vsel %vm1229, %v1228, 0
        %1255 = vmatpush.bf16.xpose.msra.mxu0 0
        %1256 = vmatpush.bf16.xpose.msra.mxu0 0
        %1257 = vmatpush.bf16.xpose.msra.mxu0 0
        %1258 = vmatpush.bf16.xpose.msra.mxu0 0
        %1259 = vmatpush.bf16.xpose.msra.mxu0 0
        %1260 = vmatpush.bf16.xpose.msra.mxu0 0
        %1261 = vmatpush.bf16.xpose.msra.mxu0 0
        %1262 = vmatpush.bf16.xpose.msra.mxu0 %v1253
        %1263 = vmatmul.bf16.gmra.mxu0 %v1250
        %v1264 = vpop.f32.mrf.mxu0
        %v1265 = vadd.f32 0.0, %v1264
        %v1266 = vpop.f32.mrf.mxu0
        %1267 = vdwg.mxu0
        %v1268 = vmul.f32 %v1246, 0.25
        %v1269 = vmul.f32 %v1265, 0.25
        %v1271 = vperm.slane %v1021, 0
        %v1273 = vadd.f32 %v1268, %v1271
        %v1274 = vadd.f32 %v1269, %v1271
        %vm1275 = vcmask 64512
        %v1276 = vsel %vm1275, %v1273, -inf
        %1277 = vmax.xlane.f32.xlu0 %v1276
        %v1278 = vpop.xlane.xlu0 %1277
        %v1279 = vsel %vm1275, %v1274, -inf
        %1280 = vmax.xlane.f32.xlu0 %v1279
        %v1281 = vpop.xlane.xlu0 %1280
        %v1282 = vsub.f32 %v1273, %v1278
        %v1283 = vsub.f32 %v1274, %v1281
        %v1284 = vmul.f32 %v1282, 1.442695
        %v1285 = vpow.pop %v1284
        %v1286 = vmul.f32 %v1283, 1.442695
        %v1287 = vpow.pop %v1286
        %v1288 = vsel %vm1275, %v1285, 0.0
        %1289 = vadd.xlane.f32.xlu0 %v1288
        %v1290 = vpop.xlane.xlu0 %1289
        %v1291 = vsel %vm1275, %v1287, 0.0
        %1292 = vadd.xlane.f32.xlu0 %v1291
        %v1293 = vpop.xlane.xlu0 %1292
        %v1294 = vrcp.pop %v1290
        %v1295 = vrcp.pop %v1293
        %v1296 = vmul.f32 %v1285, %v1294
        %v1297 = vmul.f32 %v1287, %v1295
        %v1298 = vpack.c.bf16 %v1296, %v1296
        %v1299 = vpack.c.bf16 %v1297, %v1297
        %v1300 = vpack.c.bf16 %v1197, %v1197
        %v1301 = vpack.c.bf16 %v1222, %v1222
        %v1303 = vsel %vm1275, %v1298, 0
        %vm1305 = vcmask 1043456
        %v1307 = vsel %vm1305, %v1300, 0
        %1309 = vmatpush.bf16.msra.mxu0 0
        %1310 = vmatpush.bf16.msra.mxu0 0
        %1311 = vmatpush.bf16.msra.mxu0 0
        %1312 = vmatpush.bf16.msra.mxu0 0
        %1313 = vmatpush.bf16.msra.mxu0 0
        %1314 = vmatpush.bf16.msra.mxu0 0
        %1315 = vmatpush.bf16.msra.mxu0 0
        %1316 = vmatpush.bf16.msra.mxu0 %v1307
        %1317 = vmatmul.bf16.gmra.mxu0 %v1303
        %v1318 = vpop.f32.mrf.mxu0
        %v1319 = vadd.f32 0.0, %v1318
        %v1320 = vpop.f32.mrf.mxu0
        %1321 = vdwg.mxu0
        %v1323 = vsel %vm1275, %v1299, 0
        %v1326 = vsel %vm1305, %v1301, 0
        %1328 = vmatpush.bf16.msra.mxu0 0
        %1329 = vmatpush.bf16.msra.mxu0 0
        %1330 = vmatpush.bf16.msra.mxu0 0
        %1331 = vmatpush.bf16.msra.mxu0 0
        %1332 = vmatpush.bf16.msra.mxu0 0
        %1333 = vmatpush.bf16.msra.mxu0 0
        %1334 = vmatpush.bf16.msra.mxu0 0
        %1335 = vmatpush.bf16.msra.mxu0 %v1326
        %1336 = vmatmul.bf16.gmra.mxu0 %v1323
        %v1337 = vpop.f32.mrf.mxu0
        %v1338 = vadd.f32 0.0, %v1337
        %v1339 = vpop.f32.mrf.mxu0
        %1340 = vdwg.mxu0
        %v1341 = vpack.c.bf16 %v1319, %v1319
        %v1342 = vpack.c.bf16 %v1338, %v1338
        %v1343 = vld [vmem:[%s941] sm:$0xf]
        %v1344 = vld [vmem:[%s941 + $0x4] sm:$0xf]
        %v1345 = vld [vmem:[%s941 + $0x8] sm:$0xf]
        %v1346 = vld [vmem:[%s941 + $0xc] sm:$0xf]
        %v1349 = vunpack.c.l.b16 %v1343
        %v1350 = vunpack.c.l.b16 %v1344
        %v1351 = vpack.c.b16 %v1350, %v1349
        %v1354 = vsel %vm1229, %v1341, 0
        %1356 = vmatpush.bf16.msra.mxu0 0
        %1357 = vmatpush.bf16.msra.mxu0 0
        %1358 = vmatpush.bf16.msra.mxu0 0
        %1359 = vmatpush.bf16.msra.mxu0 0
        %1360 = vmatpush.bf16.msra.mxu0 0
        %1361 = vmatpush.bf16.msra.mxu0 0
        %1362 = vmatpush.bf16.msra.mxu0 0
        %1363 = vmatpush.bf16.msra.mxu0 %v1351
        %1364 = vmatmul.bf16.gmra.mxu0 %v1354
        %v1365 = vpop.f32.mrf.mxu0
        %v1366 = vadd.f32 0.0, %v1365
        %v1367 = vpop.f32.mrf.mxu0
        %1368 = vdwg.mxu0
        %v1371 = vunpack.c.l.b16 %v1345
        %v1372 = vunpack.c.l.b16 %v1346
        %v1373 = vpack.c.b16 %v1372, %v1371
        %v1376 = vsel %vm1229, %v1342, 0
        %1378 = vmatpush.bf16.msra.mxu0 0
        %1379 = vmatpush.bf16.msra.mxu0 0
        %1380 = vmatpush.bf16.msra.mxu0 0
        %1381 = vmatpush.bf16.msra.mxu0 0
        %1382 = vmatpush.bf16.msra.mxu0 0
        %1383 = vmatpush.bf16.msra.mxu0 0
        %1384 = vmatpush.bf16.msra.mxu0 0
        %1385 = vmatpush.bf16.msra.mxu0 %v1373
        %1386 = vmatmul.bf16.gmra.mxu0 %v1376
        %v1387 = vpop.f32.mrf.mxu0
        %v1388 = vadd.f32 0.0, %v1387
        %v1389 = vpop.f32.mrf.mxu0
        %1390 = vdwg.mxu0
        %v1391 = vsel %vm1051, %v1366, 0.0
        %v1392 = vsel %vm1051, %v1388, 0.0
        %v1393 = vadd.f32 %v1391, %v1392
        %v1394 = vld [vmem:[%s944] sm:$0x1]
        %v1396 = vperm.slane %v1394, 0
        %v1398 = vadd.f32 %v1393, %v1396
        %v1399 = vadd.f32 %v1020, %v1398
        %v1400 = vld [vmem:[%s947] sm:$0x1]
        %v1401 = vld [vmem:[%s950] sm:$0x1]
        %v1402 = vsel %vm1051, %v1399, 0.0
        %1403 = vadd.xlane.f32.xlu0 %v1402
        %v1404 = vpop.xlane.xlu0 %1403
        %v1405 = vrcp.pop 32.0
        %v1406 = vmul.f32 32.0, %v1405
        %v1407 = vsub.f32 1.0, %v1406
        %v1408 = vmul.f32 %v1405, %v1407
        %v1409 = vadd.f32 %v1405, %v1408
        %vm1410 = vweird.f32 %v1405
        %v1411 = vsel %vm1410, %v1405, %v1409
        %v1412 = vmul.f32 %v1404, %v1411
        %v1413 = vsub.f32 %v1399, %v1412
        %v1414 = vmul.f32 %v1413, %v1413
        %v1415 = vsel %vm1051, %v1414, 0.0
        %1416 = vadd.xlane.f32.xlu0 %v1415
        %v1417 = vpop.xlane.xlu0 %1416
        %v1418 = vmul.f32 %v1417, %v1411
        %v1419 = vadd.f32 %v1418, 1e-12
        %v1420 = vrsqrt.pop %v1419
        %v1421 = vmul.f32 %v1420, %v1419
        %v1422 = vmul.f32 %v1421, %v1420
        %v1423 = vmul.f32 0.5, %v1422
        %v1424 = vsub.f32 1.5, %v1423
        %v1425 = vmul.f32 %v1420, %v1424
        %vm1426 = vweird.f32 %v1419
        %vm1427 = vweird.f32 %v1420
        %vm1428 = vmor %vm1426, %vm1427
        %v1429 = vsel %vm1428, %v1420, %v1425
        %v1430 = vmul.f32 %v1413, %v1429
        %v1432 = vperm.slane %v1400, 0
        %v1434 = vmul.f32 %v1430, %v1432
        %v1436 = vperm.slane %v1401, 0
        %v1438 = vadd.f32 %v1434, %v1436
        %v1439 = vpack.c.bf16 %v1438, %v1438
        %v1440 = vld [vmem:[%s955] sm:$0xf]
        %v1441 = vld [vmem:[%s955 + $0x4] sm:$0xf]
        %v1442 = vld [vmem:[%s955 + $0x8] sm:$0xf]
        %v1443 = vld [vmem:[%s955 + $0xc] sm:$0xf]
        %v1444 = vld [vmem:[%s958] sm:$0x1]
        %v1446 = vperm.slane %v1444, 0
        %v1452 = vunpack.c.l.b16 %v1440
        %v1453 = vunpack.c.l.b16 %v1441
        %v1454 = vunpack.c.l.b16 %v1442
        %v1455 = vunpack.c.l.b16 %v1443
        %v1456 = vpack.c.b16 %v1453, %v1452
        %v1457 = vpack.c.b16 %v1455, %v1454
        %v1461 = vsel %vm1051, %v1439, 0
        %1463 = vmatpush.bf16.msra.mxu0 0
        %1464 = vmatpush.bf16.msra.mxu0 0
        %1465 = vmatpush.bf16.msra.mxu0 0
        %1466 = vmatpush.bf16.msra.mxu0 0
        %1467 = vmatpush.bf16.msra.mxu0 0
        %1468 = vmatpush.bf16.msra.mxu0 0
        %1469 = vmatpush.bf16.msra.mxu0 %v1457
        %1470 = vmatpush.bf16.msra.mxu0 %v1456
        %1471 = vmatmul.bf16.gmra.mxu0 %v1461
        %v1472 = vpop.f32.mrf.mxu0
        %v1473 = vadd.f32 %v1446, %v1472
        %v1474 = vpop.f32.mrf.mxu0
        %1475 = vdwg.mxu0
        %v1476 = vmul.f32 %v1473, 0.5
        %v1477 = vmul.f32 %v1473, 0.044715
        %v1478 = vmul.f32 %v1477, %v1473
        %v1479 = vmul.f32 %v1478, %v1473
        %v1480 = vadd.f32 %v1473, %v1479
        %v1481 = vmul.f32 %v1480, 0.7978846
        %v1482 = vtanh.pop %v1481
        %v1483 = vadd.f32 %v1482, 1.0
        %v1484 = vmul.f32 %v1476, %v1483
        %v1485 = vpack.c.bf16 %v1484, %v1484
        %v1486 = vld [vmem:[%s963] sm:$0xf]
        %v1487 = vld [vmem:[%s963 + $0x4] sm:$0xf]
        %v1488 = vld [vmem:[%s963 + $0x8] sm:$0xf]
        %v1489 = vld [vmem:[%s963 + $0xc] sm:$0xf]
        %v1490 = vld [vmem:[%s963 + $0x10] sm:$0xf]
        %v1491 = vld [vmem:[%s963 + $0x14] sm:$0xf]
        %v1492 = vld [vmem:[%s963 + $0x18] sm:$0xf]
        %v1493 = vld [vmem:[%s963 + $0x1c] sm:$0xf]
        %v1494 = vld [vmem:[%s966] sm:$0x1]
        %v1496 = vperm.slane %v1494, 0
        %v1506 = vunpack.c.l.b16 %v1486
        %v1507 = vunpack.c.l.b16 %v1487
        %v1508 = vunpack.c.l.b16 %v1488
        %v1509 = vunpack.c.l.b16 %v1489
        %v1510 = vunpack.c.l.b16 %v1490
        %v1511 = vunpack.c.l.b16 %v1491
        %v1512 = vunpack.c.l.b16 %v1492
        %v1513 = vunpack.c.l.b16 %v1493
        %v1514 = vpack.c.b16 %v1507, %v1506
        %v1515 = vpack.c.b16 %v1509, %v1508
        %v1516 = vpack.c.b16 %v1511, %v1510
        %v1517 = vpack.c.b16 %v1513, %v1512
        %vm1522 = vcmask 523264
        %v1524 = vsel %vm1522, %v1485, 0
        %1526 = vmatpush.bf16.msra.mxu0 0
        %1527 = vmatpush.bf16.msra.mxu0 0
        %1528 = vmatpush.bf16.msra.mxu0 0
        %1529 = vmatpush.bf16.msra.mxu0 0
        %1530 = vmatpush.bf16.msra.mxu0 %v1517
        %1531 = vmatpush.bf16.msra.mxu0 %v1516
        %1532 = vmatpush.bf16.msra.mxu0 %v1515
        %1533 = vmatpush.bf16.msra.mxu0 %v1514
        %1534 = vmatmul.bf16.gmra.mxu0 %v1524
        %v1535 = vpop.f32.mrf.mxu0
        %v1536 = vadd.f32 %v1496, %v1535
        %v1537 = vpop.f32.mrf.mxu0
        %1538 = vdwg.mxu0
        %v1539 = vadd.f32 %v1438, %v1536
        %v1540 = vld [vmem:[%s969] sm:$0x1]
        %v1541 = vld [vmem:[%s972] sm:$0x1]
        %v1542 = vsel %vm1051, %v1539, 0.0
        %1543 = vadd.xlane.f32.xlu0 %v1542
        %v1544 = vpop.xlane.xlu0 %1543
        %v1545 = vmul.f32 %v1544, %v1411
        %v1546 = vsub.f32 %v1539, %v1545
        %v1547 = vmul.f32 %v1546, %v1546
        %v1548 = vsel %vm1051, %v1547, 0.0
        %1549 = vadd.xlane.f32.xlu0 %v1548
        %v1550 = vpop.xlane.xlu0 %1549
        %v1551 = vmul.f32 %v1550, %v1411
        %v1552 = vadd.f32 %v1551, 1e-12
        %v1553 = vrsqrt.pop %v1552
        %v1554 = vmul.f32 %v1553, %v1552
        %v1555 = vmul.f32 %v1554, %v1553
        %v1556 = vmul.f32 0.5, %v1555
        %v1557 = vsub.f32 1.5, %v1556
        %v1558 = vmul.f32 %v1553, %v1557
        %vm1559 = vweird.f32 %v1552
        %vm1560 = vweird.f32 %v1553
        %vm1561 = vmor %vm1559, %vm1560
        %v1562 = vsel %vm1561, %v1553, %v1558
        %v1563 = vmul.f32 %v1546, %v1562
        %v1565 = vperm.slane %v1540, 0
        %v1567 = vmul.f32 %v1563, %v1565
        %v1569 = vperm.slane %v1541, 0
        %v1571 = vadd.f32 %v1567, %v1569
        %1572 = vst.msk [vmem:[#allocation2] sm:$0xff] %vm1051, %v1571
        %p1573 = scmp.eq.s32.totalorder %s41, 1
        // Predicated region
        $region113: #{bert_wrapper_forward.1} parent=107 // pred_check
          %p1574 = pneg %p1573
        $region114: #{bert_wrapper_forward.1} parent=107 // pred_check_branch
          %1576 = sbr.rel (%p1574) target = $region116
        $region115: #{bert_wrapper_forward.1} parent=107 // pred_region
          %v1577 = vld [vmem:[#allocation2] sm:$0xff]
          %v1578 = vsel %vm1051, %v1577, 0.0
          %v1579 = vrot.slane %v1578, 4
          %v1580 = vadd.f32 %v1578, %v1579
          %v1581 = vrot.slane %v1580, 2
          %v1582 = vadd.f32 %v1580, %v1581
          %v1583 = vrot.slane %v1582, 1
          %v1584 = vadd.f32 %v1582, %v1583
          %v1585 = vrcp.pop 8.0
          %v1586 = vmul.f32 8.0, %v1585
          %v1587 = vsub.f32 1.0, %v1586
          %v1588 = vmul.f32 %v1585, %v1587
          %v1589 = vadd.f32 %v1585, %v1588
          %vm1590 = vweird.f32 %v1585
          %v1591 = vsel %vm1590, %v1585, %v1589
          %v1592 = vmul.f32 %v1584, %v1591
          %v1593 = vpack.c.bf16 %v1592, %v1592
          %v1594 = vld [vmem:[%s20] sm:$0xf]
          %v1595 = vld [vmem:[%s20 + $0x4] sm:$0xf]
          %v1596 = vld [vmem:[%s20 + $0x8] sm:$0xf]
          %v1597 = vld [vmem:[%s20 + $0xc] sm:$0xf]
          %v1598 = vld [vmem:[%s21] sm:$0x1]
          %v1603 = vunpack.c.l.b16 %v1594
          %v1604 = vunpack.c.l.b16 %v1595
          %v1605 = vunpack.c.l.b16 %v1596
          %v1606 = vunpack.c.l.b16 %v1597
          %v1607 = vpack.c.b16 %v1604, %v1603
          %v1608 = vpack.c.b16 %v1606, %v1605
          %v1612 = vsel %vm1051, %v1593, 0
          %1614 = vmatpush.bf16.msra.mxu0 0
          %1615 = vmatpush.bf16.msra.mxu0 0
          %1616 = vmatpush.bf16.msra.mxu0 0
          %1617 = vmatpush.bf16.msra.mxu0 0
          %1618 = vmatpush.bf16.msra.mxu0 0
          %1619 = vmatpush.bf16.msra.mxu0 0
          %1620 = vmatpush.bf16.msra.mxu0 %v1608
          %1621 = vmatpush.bf16.msra.mxu0 %v1607
          %1622 = vmatmul.bf16.gmra.mxu0 %v1612
          %v1623 = vpop.f32.mrf.mxu0
          %v1624 = vadd.f32 %v1598, %v1623
          %v1625 = vpop.f32.mrf.mxu0
          %1626 = vdwg.mxu0
          %vm1627 = vcmask 122880
          %1628 = vst.msk [vmem:[%s902] sm:$0x1] %vm1627, %v1624
        $region116: #{bert_wrapper_forward.1} parent=107 // pred_fallthru
          _
        %s1629 = sand.u32 %s608, 1
        %s1630 = scalar_lea.sflag [#allocation4], %s1629
        %s1631 = sand.u32 %s608, 1
        %s1632 = scalar_lea.vmem [#allocation3], %s1631
        // Predicated region
        $region117: #{bert_wrapper_forward.1} parent=107 // pred_check
          %p1633 = pneg %p618
        $region118: #{bert_wrapper_forward.1} parent=107 // pred_check_branch
          %1635 = sbr.rel (%p1633) target = $region120
        $region119: #{bert_wrapper_forward.1} parent=107 // pred_region
          %1637 = vsyncadd %s1630, 0
          %s1638 = scalar_lea.hbm %s22, %s40
          %s1640 = sshll.u32 %s1632, 4
          %s1641 = int_to_ptr.vmem [resolvable:$true] %s1640
          %s1642 = sshll.u32 %s1638, 4
          %s1643 = int_to_ptr.hbm [resolvable:$true] %s1642
          %1645 = dma.vmem_to_hbm [thread:$0]  %s1641, 16, %s1643, %s1630
        $region120: #{bert_wrapper_forward.1} parent=107 // pred_fallthru
          _
      $region108: #{bert_wrapper_forward.1} parent=5 // pred_fallthru
        _
      %p1646 = scmp.le.s32.totalorder 2, %s31
      // Predicated region
      $region121: #{bert_wrapper_forward.1} parent=5 // pred_check
        %p1647 = pneg %p1646
      $region122: #{bert_wrapper_forward.1} parent=5 // pred_check_branch
        %1649 = sbr.rel (%p1647) target = $region124
      $region123: #{bert_wrapper_forward.1} parent=5 // pred_region
        %s1650 = ssub.s32 %s31, 2
        // Predicated region
        $region125: #{bert_wrapper_forward.1} parent=123 // pred_check
          %p1651 = pneg %p624
        $region126: #{bert_wrapper_forward.1} parent=123 // pred_check_branch
          %1653 = sbr.rel (%p1651) target = $region128
        $region127: #{bert_wrapper_forward.1} parent=123 // pred_region
          %s1654 = sand.u32 %s609, 1
          %s1655 = scalar_lea.sflag [#allocation4], %s1654
          %s1656 = sand.u32 %s609, 1
          %s1657 = scalar_lea.vmem [#allocation3], %s1656
          %1659 = dma.done %s1655, 16
        $region128: #{bert_wrapper_forward.1} parent=123 // pred_fallthru
          _
      $region124: #{bert_wrapper_forward.1} parent=5 // pred_fallthru
        _
    $region6: #{bert_wrapper_forward.1} parent=1 // loop_footer
      %s35 = sadd.s32 1, %s31
    $region7: #{bert_wrapper_forward.1} parent=1 // loop_footer_branch
      %30 = sbr.rel target = $region3
    $region8: #{bert_wrapper_forward.1} parent=1 // loop_exit
      _
    %1660 = vsyncpa [#allocation4], 1
    %s1661 = scalar_lea.sflag [#allocation4], 1
    %1662 = vsyncpa %s1661, 1

</llo_original>
